<compile_context>
chip_gen: v7x
topology: tpu7x:2x2x1
jax: 0.10.0
libtpu: 0.0.40
codegen_flags: <defaults>
</compile_context>

<pallas_src>
import functools
import math

import jax
import jax.numpy as jnp
from jax.experimental import pallas as pl
from jax.experimental.pallas import tpu as pltpu


def _gelu_tanh(x):
    # tanh-approximate GELU: the tanh goes to the EUP slot instead of a ~10-op
    # VALU erf polynomial over the widest elementwise tensor in the kernel.
    c = math.sqrt(2.0 / math.pi)
    return 0.5 * x * (1.0 + jnp.tanh(c * (x + 0.044715 * (x * x * x))))


def _layer_norm(v, w, b, eps=1e-5):
    mu = jnp.mean(v, axis=-1, keepdims=True)
    var = jnp.mean((v - mu) * (v - mu), axis=-1, keepdims=True)
    return (v - mu) * jax.lax.rsqrt(var + eps) * w + b


def _block_kernel(x_ref, mask_ref,
                  ln1w_ref, ln1b_ref,
                  w_in_ref, b_in_ref,
                  w_out_ref, b_out_ref,
                  ln2w_ref, ln2b_ref,
                  w_fc_ref, b_fc_ref,
                  w_pj_ref, b_pj_ref,
                  o_ref,
                  *, n_head, mlp_chunk):
    S, D = o_ref.shape
    hd = D // n_head
    layer = pl.program_id(1)

    # Layer 0: seed the resident activation from the input block.  The output
    # block index does not depend on the layer axis, so o_ref stays in the
    # same VMEM buffer for the whole layer loop of this batch block.
    @pl.when(layer == 0)
    def _():
        o_ref[...] = x_ref[...]

    x = o_ref[...].astype(jnp.float32)                       # [S, D] residual stream (f32)

    # ---- attention branch: x + out_proj(MHA(ln_1(x))) ----
    xn = _layer_norm(x, ln1w_ref[...], ln1b_ref[...])
    qkv = jnp.dot(xn.astype(jnp.bfloat16), w_in_ref[...],
                  preferred_element_type=jnp.float32) + b_in_ref[...]    # [S, 3D] f32

    scale = 1.0 / math.sqrt(hd)
    mask = mask_ref[...].astype(jnp.float32)                 # [S, S] additive mask
    w_out = w_out_ref[...]                                   # [D, D] bf16

    attn = jnp.zeros((S, D), jnp.float32)
    for h in range(n_head):
        q = (qkv[:, h * hd:(h + 1) * hd] * scale).astype(jnp.bfloat16)   # [S, hd]
        k = qkv[:, D + h * hd:D + (h + 1) * hd].astype(jnp.bfloat16)
        v = qkv[:, 2 * D + h * hd:2 * D + (h + 1) * hd].astype(jnp.bfloat16)

        # s = q @ k^T  (bf16 in, f32 accumulate)
        s = jax.lax.dot_general(q, k, (((1,), (1,)), ((), ())),
                                preferred_element_type=jnp.float32)      # [S, S]
        s = s + mask
        s = s - jnp.max(s, axis=-1, keepdims=True)
        p = jnp.exp(s)
        p = p * pl.reciprocal(jnp.sum(p, axis=-1, keepdims=True), approx=True)

        o_h = jnp.dot(p.astype(jnp.bfloat16), v,
                      preferred_element_type=jnp.float32)                # [S, hd]
        # Fused output projection: attn += o_h @ W_out[h*hd:(h+1)*hd, :].
        attn = attn + jnp.dot(o_h.astype(jnp.bfloat16),
                              w_out[h * hd:(h + 1) * hd, :],
                              preferred_element_type=jnp.float32)

    x1 = x + attn + b_out_ref[...]

    # ---- MLP branch: x + c_proj(gelu(c_fc(ln_2(x)))), chunked over hidden ----
    x1n = _layer_norm(x1, ln2w_ref[...], ln2b_ref[...]).astype(jnp.bfloat16)
    M = w_fc_ref.shape[-1]
    mlp = jnp.zeros((S, D), jnp.float32)
    for c in range(0, M, mlp_chunk):
        hf = jnp.dot(x1n, w_fc_ref[:, c:c + mlp_chunk],
                     preferred_element_type=jnp.float32) + b_fc_ref[:, c:c + mlp_chunk]
        g = _gelu_tanh(hf).astype(jnp.bfloat16)
        mlp = mlp + jnp.dot(g, w_pj_ref[c:c + mlp_chunk, :],
                            preferred_element_type=jnp.float32)

    x2 = x1 + mlp + b_pj_ref[...]
    o_ref[...] = x2.astype(o_ref.dtype)


_WEIGHT_NAMES = ("ln1_w", "ln1_b", "w_in", "b_in", "w_out", "b_out",
                 "ln2_w", "ln2_b", "w_fc", "b_fc", "w_pj", "b_pj")


def _pick_mlp_chunk(M):
    # Largest convenient chunk that divides the hidden width; caps the
    # [tokens, chunk] f32 GELU intermediate.
    if M <= 2048:
        return M
    for cand in (2048, 1024, 512, 256, 128):
        if M % cand == 0:
            return cand
    return M


def _vmem_limit_bytes(S, D, M, mlp_chunk):
    w = 2 * 2 * (4 * D * D + 2 * D * M)            # bf16 weights, double-buffered
    b = 2 * 4 * (8 * D + 4 * M)                    # f32 biases / LN params
    acts = 2 * 4 * S * D * 2 + 4 * S * S           # x/out blocks + mask
    live = 4 * S * (3 * D + 4 * D + mlp_chunk) + 2 * 4 * S * S
    total = 2 * (w + b + acts + live) + (8 << 20)  # generous headroom
    return int(min(max(total, 32 << 20), 64 << 20))


def transformer_forward(x_bsd, mask, params, *, n_head):
    """x_bsd: [B, S, D] f32. mask: [S, S] additive f32. params: stacked per-layer dict."""
    B, S, D = x_bsd.shape
    L = params["w_in"].shape[0]
    M = params["w_fc"].shape[-1]
    assert D % n_head == 0, "width must be divisible by heads"
    hd = D // n_head
    mlp_chunk = _pick_mlp_chunk(M)

    kernel = functools.partial(_block_kernel, n_head=n_head, mlp_chunk=mlp_chunk)

    def layer_spec(arr):
        nd = arr.ndim
        return pl.BlockSpec((None,) + arr.shape[1:],
                            lambda b, l, _n=nd: (l,) + (0,) * (_n - 1))

    weight_args = [params[k] for k in _WEIGHT_NAMES]
    weight_specs = [layer_spec(a) for a in weight_args]

    in_specs = ([pl.BlockSpec((None, S, D), lambda b, l: (b, 0, 0)),   # x (read at layer 0)
                 pl.BlockSpec((S, S), lambda b, l: (0, 0))]            # additive mask
                + weight_specs)
    out_spec = pl.BlockSpec((None, S, D), lambda b, l: (b, 0, 0))      # resident across layers

    flops = B * L * (2 * S * (4 * D * D + 2 * D * M) + 4 * S * S * D)
    transcendentals = B * L * (n_head * S * S + S * M)
    bytes_accessed = (B * L * (2 * (4 * D * D + 2 * D * M) + 4 * (8 * D + 4 * M))
                      + 2 * B * S * D * 4 + S * S * 4)

    return pl.pallas_call(
        kernel,
        out_shape=jax.ShapeDtypeStruct((B, S, D), x_bsd.dtype),
        grid=(B, L),
        in_specs=in_specs,
        out_specs=out_spec,
        compiler_params=pltpu.CompilerParams(
            dimension_semantics=("parallel", "arbitrary"),
            vmem_limit_bytes=_vmem_limit_bytes(S, D, M, mlp_chunk)),
        cost_estimate=pl.CostEstimate(flops=int(flops),
                                      transcendentals=int(transcendentals),
                                      bytes_accessed=int(bytes_accessed)),
    )(x_bsd, mask, *weight_args)


@functools.partial(jax.jit, static_argnames=("n_head",))
def _jit_forward(x_sbd, mask, params, n_head):
    x = jnp.transpose(x_sbd, (1, 0, 2))                 # [S, B, D] -> [B, S, D]
    y = transformer_forward(x, mask, params, n_head=n_head)
    return jnp.transpose(y, (1, 0, 2))                  # -> [S, B, D]


def _init_layer(key, d, m):
    k0, k1, k2, k3 = jax.random.split(key, 4)
    std = 0.02
    in_w = jax.random.normal(k0, (3 * d, d), jnp.float32) * std   # nn.MultiheadAttention in_proj
    out_w = jax.random.normal(k1, (d, d), jnp.float32) * std      # out_proj
    fc_w = jax.random.normal(k2, (m, d), jnp.float32) * std       # mlp.c_fc
    pj_w = jax.random.normal(k3, (d, m), jnp.float32) * std       # mlp.c_proj
    return dict(
        ln1_w=jnp.ones((1, d), jnp.float32), ln1_b=jnp.zeros((1, d), jnp.float32),
        w_in=in_w.T.astype(jnp.bfloat16), b_in=jnp.zeros((1, 3 * d), jnp.float32),
        w_out=out_w.T.astype(jnp.bfloat16), b_out=jnp.zeros((1, d), jnp.float32),
        ln2_w=jnp.ones((1, d), jnp.float32), ln2_b=jnp.zeros((1, d), jnp.float32),
        w_fc=fc_w.T.astype(jnp.bfloat16), b_fc=jnp.zeros((1, m), jnp.float32),
        w_pj=pj_w.T.astype(jnp.bfloat16), b_pj=jnp.zeros((1, d), jnp.float32),
    )


class PallasTransformer:
    """Forward-only equivalent of open_clip Transformer (ls_init_value=None)."""

    def __init__(self, width, layers, heads, mlp_ratio=4.0, seed=0):
        self.width, self.layers, self.heads = width, layers, heads
        mlp_width = int(width * mlp_ratio)
        keys = jax.random.split(jax.random.PRNGKey(seed), layers)
        per_layer = [_init_layer(k, width, mlp_width) for k in keys]
        # Stack with a leading layer dim so the layer grid axis can index them.
        self.params = {k: jnp.stack([p[k] for p in per_layer]) for k in _WEIGHT_NAMES}

    def __call__(self, x, attn_mask=None):
        # x: [seq, batch, width] (PyTorch batch_first=False convention)
        S = x.shape[0]
        if attn_mask is None:
            mask = jnp.zeros((S, S), jnp.float32)
        else:
            # TODO(synk): boolean masks (torch "True = disallow") are not
            # converted; only additive float masks are supported here.
            mask = jnp.asarray(attn_mask, jnp.float32)
        return _jit_forward(x, mask, self.params, n_head=self.heads)


if __name__ == "__main__":
    seq, batch, width, heads, layers = 8, 2, 32, 4, 2
    model = PallasTransformer(width=width, layers=layers, heads=heads,
                              mlp_ratio=4.0, seed=0)

    x = jax.random.normal(jax.random.PRNGKey(0), (seq, batch, width), jnp.float32)
    out = model(x)
    jax.block_until_ready(out)

    assert out.shape == (seq, batch, width), out.shape
    assert bool(jnp.all(jnp.isfinite(out)))
    print("KERNEL_OK")
</pallas_src>

<mosaic_0001>
module attributes {stable_mosaic.version = 11 : i64} {
  func.func @_block_kernel(%arg0: i32, %arg1: i32, %arg2: memref<1x8x32xf32, #tpu.memory_space<vmem>>, %arg3: memref<8x8xf32, #tpu.memory_space<vmem>>, %arg4: memref<1x1x32xf32, #tpu.memory_space<vmem>>, %arg5: memref<1x1x32xf32, #tpu.memory_space<vmem>>, %arg6: memref<1x32x96xbf16, #tpu.memory_space<vmem>>, %arg7: memref<1x1x96xf32, #tpu.memory_space<vmem>>, %arg8: memref<1x32x32xbf16, #tpu.memory_space<vmem>>, %arg9: memref<1x1x32xf32, #tpu.memory_space<vmem>>, %arg10: memref<1x1x32xf32, #tpu.memory_space<vmem>>, %arg11: memref<1x1x32xf32, #tpu.memory_space<vmem>>, %arg12: memref<1x32x128xbf16, #tpu.memory_space<vmem>>, %arg13: memref<1x1x128xf32, #tpu.memory_space<vmem>>, %arg14: memref<1x128x32xbf16, #tpu.memory_space<vmem>>, %arg15: memref<1x1x32xf32, #tpu.memory_space<vmem>>, %arg16: memref<1x8x32xf32, #tpu.memory_space<vmem>>) attributes {dimension_semantics = [#tpu.dimension_semantics<parallel>, #tpu.dimension_semantics<arbitrary>], iteration_bounds = array<i64: 2, 2>, scalar_prefetch = 0 : i64, scratch_operands = 0 : i64, tpu.core_type = #tpu.core_type<tc>, window_params = [{transform_indices = @transform_0, window_bounds = array<i64: 1, 8, 32>}, {pipeline_mode = #tpu.pipeline_mode<synchronous>, transform_indices = @transform_1, window_bounds = array<i64: 8, 8>}, {transform_indices = @transform_2, window_bounds = array<i64: 1, 1, 32>}, {transform_indices = @transform_3, window_bounds = array<i64: 1, 1, 32>}, {transform_indices = @transform_4, window_bounds = array<i64: 1, 32, 96>}, {transform_indices = @transform_5, window_bounds = array<i64: 1, 1, 96>}, {transform_indices = @transform_6, window_bounds = array<i64: 1, 32, 32>}, {transform_indices = @transform_7, window_bounds = array<i64: 1, 1, 32>}, {transform_indices = @transform_8, window_bounds = array<i64: 1, 1, 32>}, {transform_indices = @transform_9, window_bounds = array<i64: 1, 1, 32>}, {transform_indices = @transform_10, window_bounds = array<i64: 1, 32, 128>}, {transform_indices = @transform_11, window_bounds = array<i64: 1, 1, 128>}, {transform_indices = @transform_12, window_bounds = array<i64: 1, 128, 32>}, {transform_indices = @transform_13, window_bounds = array<i64: 1, 1, 32>}, {transform_indices = @transform_14, window_bounds = array<i64: 1, 8, 32>}]} {
    %c0_i32 = arith.constant 0 : i32
    %0 = arith.cmpi eq, %arg1, %c0_i32 : i32
    %1 = arith.extui %0 : i1 to i32
    %c0_i32_0 = arith.constant 0 : i32
    %2 = arith.cmpi ne, %1, %c0_i32_0 : i32
    scf.if %2 {
      %c0_86 = arith.constant 0 : index
      %c0_87 = arith.constant 0 : index
      %c0_88 = arith.constant 0 : index
      %217 = vector.load %arg2[%c0_86, %c0_87, %c0_88] : memref<1x8x32xf32, #tpu.memory_space<vmem>>, vector<1x8x32xf32>
      %218 = vector.shape_cast %217 : vector<1x8x32xf32> to vector<8x32xf32>
      %c0_89 = arith.constant 0 : index
      %c0_90 = arith.constant 0 : index
      %c0_91 = arith.constant 0 : index
      %219 = vector.load %arg16[%c0_89, %c0_90, %c0_91] : memref<1x8x32xf32, #tpu.memory_space<vmem>>, vector<1x8x32xf32>
      %220 = vector.shape_cast %219 : vector<1x8x32xf32> to vector<8x32xf32>
      %221 = vector.shape_cast %218 : vector<8x32xf32> to vector<1x8x32xf32>
      tpu.vector_store %arg16[%c0_89, %c0_90, %c0_91], %221 {strides = array<i32>} : memref<1x8x32xf32, #tpu.memory_space<vmem>>, vector<1x8x32xf32>,
    } else {
    }
    %c0 = arith.constant 0 : index
    %c0_1 = arith.constant 0 : index
    %c0_2 = arith.constant 0 : index
    %3 = vector.load %arg16[%c0, %c0_1, %c0_2] : memref<1x8x32xf32, #tpu.memory_space<vmem>>, vector<1x8x32xf32>
    %4 = vector.shape_cast %3 : vector<1x8x32xf32> to vector<8x32xf32>
    %c0_3 = arith.constant 0 : index
    %c0_4 = arith.constant 0 : index
    %c0_5 = arith.constant 0 : index
    %5 = vector.load %arg4[%c0_3, %c0_4, %c0_5] : memref<1x1x32xf32, #tpu.memory_space<vmem>>, vector<1x1x32xf32>
    %6 = vector.shape_cast %5 : vector<1x1x32xf32> to vector<1x32xf32>
    %c0_6 = arith.constant 0 : index
    %c0_7 = arith.constant 0 : index
    %c0_8 = arith.constant 0 : index
    %7 = vector.load %arg5[%c0_6, %c0_7, %c0_8] : memref<1x1x32xf32, #tpu.memory_space<vmem>>, vector<1x1x32xf32>
    %8 = vector.shape_cast %7 : vector<1x1x32xf32> to vector<1x32xf32>
    %cst = arith.constant dense<0.000000e+00> : vector<8xf32>
    %9 = vector.multi_reduction <add>, %4, %cst [1] : vector<8x32xf32> to vector<8xf32>
    %10 = vector.shape_cast %9 : vector<8xf32> to vector<8x1xf32>
    %cst_9 = arith.constant 3.200000e+01 : f32
    %11 = vector.broadcast %cst_9 : f32 to vector<8x1xf32>
    %12 = arith.divf %10, %11 : vector<8x1xf32>
    %13 = vector.broadcast %12 : vector<8x1xf32> to vector<8x32xf32>
    %14 = arith.subf %4, %13 : vector<8x32xf32>
    %15 = vector.broadcast %12 : vector<8x1xf32> to vector<8x32xf32>
    %16 = arith.subf %4, %15 : vector<8x32xf32>
    %17 = arith.mulf %14, %16 : vector<8x32xf32>
    %cst_10 = arith.constant dense<0.000000e+00> : vector<8xf32>
    %18 = vector.multi_reduction <add>, %17, %cst_10 [1] : vector<8x32xf32> to vector<8xf32>
    %19 = vector.shape_cast %18 : vector<8xf32> to vector<8x1xf32>
    %cst_11 = arith.constant 3.200000e+01 : f32
    %20 = vector.broadcast %cst_11 : f32 to vector<8x1xf32>
    %21 = arith.divf %19, %20 : vector<8x1xf32>
    %22 = vector.broadcast %12 : vector<8x1xf32> to vector<8x32xf32>
    %23 = arith.subf %4, %22 : vector<8x32xf32>
    %cst_12 = arith.constant 9.99999974E-6 : f32
    %24 = vector.broadcast %cst_12 : f32 to vector<8x1xf32>
    %25 = arith.addf %21, %24 : vector<8x1xf32>
    %26 = math.rsqrt %25 : vector<8x1xf32>
    %27 = vector.broadcast %26 : vector<8x1xf32> to vector<8x32xf32>
    %28 = arith.mulf %23, %27 : vector<8x32xf32>
    %29 = vector.broadcast %6 : vector<1x32xf32> to vector<8x32xf32>
    %30 = arith.mulf %28, %29 : vector<8x32xf32>
    %31 = vector.broadcast %8 : vector<1x32xf32> to vector<8x32xf32>
    %32 = arith.addf %30, %31 : vector<8x32xf32>
    %33 = arith.truncf %32 : vector<8x32xf32> to vector<8x32xbf16>
    %c0_13 = arith.constant 0 : index
    %c0_14 = arith.constant 0 : index
    %c0_15 = arith.constant 0 : index
    %34 = vector.load %arg6[%c0_13, %c0_14, %c0_15] : memref<1x32x96xbf16, #tpu.memory_space<vmem>>, vector<1x32x96xbf16>
    %35 = vector.shape_cast %34 : vector<1x32x96xbf16> to vector<32x96xbf16>
    %cst_16 = arith.constant dense<0.000000e+00> : vector<8x96xf32>
    %36 = tpu.matmul %33, %35, %cst_16 {dimension_numbers = #tpu.dot_dimension_numbers<[1], [0], [0], [1], [0, 0, 1, 1], [], []>} : vector<8x32xbf16>, vector<32x96xbf16>, vector<8x96xf32> -> vector<8x96xf32>
    %c0_17 = arith.constant 0 : index
    %c0_18 = arith.constant 0 : index
    %c0_19 = arith.constant 0 : index
    %37 = vector.load %arg7[%c0_17, %c0_18, %c0_19] : memref<1x1x96xf32, #tpu.memory_space<vmem>>, vector<1x1x96xf32>
    %38 = vector.shape_cast %37 : vector<1x1x96xf32> to vector<1x96xf32>
    %39 = vector.broadcast %38 : vector<1x96xf32> to vector<8x96xf32>
    %40 = arith.addf %36, %39 : vector<8x96xf32>
    %c0_20 = arith.constant 0 : index
    %c0_21 = arith.constant 0 : index
    %41 = vector.load %arg3[%c0_20, %c0_21] : memref<8x8xf32, #tpu.memory_space<vmem>>, vector<8x8xf32>
    %c0_22 = arith.constant 0 : index
    %c0_23 = arith.constant 0 : index
    %c0_24 = arith.constant 0 : index
    %42 = vector.load %arg8[%c0_22, %c0_23, %c0_24] : memref<1x32x32xbf16, #tpu.memory_space<vmem>>, vector<1x32x32xbf16>
    %43 = vector.shape_cast %42 : vector<1x32x32xbf16> to vector<32x32xbf16>
    %cst_25 = arith.constant 0.000000e+00 : f32
    %44 = vector.broadcast %cst_25 : f32 to vector<8x32xf32>
    %45 = vector.extract_strided_slice %40 {offsets = [0, 0], sizes = [8, 8], strides = [1, 1]} : vector<8x96xf32> to vector<8x8xf32>
    %cst_26 = arith.constant 0.353553385 : f32
    %46 = vector.broadcast %cst_26 : f32 to vector<8x8xf32>
    %47 = arith.mulf %45, %46 : vector<8x8xf32>
    %48 = arith.truncf %47 : vector<8x8xf32> to vector<8x8xbf16>
    %49 = vector.extract_strided_slice %40 {offsets = [0, 32], sizes = [8, 8], strides = [1, 1]} : vector<8x96xf32> to vector<8x8xf32>
    %50 = arith.truncf %49 : vector<8x8xf32> to vector<8x8xbf16>
    %51 = vector.extract_strided_slice %40 {offsets = [0, 64], sizes = [8, 8], strides = [1, 1]} : vector<8x96xf32> to vector<8x8xf32>
    %52 = arith.truncf %51 : vector<8x8xf32> to vector<8x8xbf16>
    %cst_27 = arith.constant dense<0.000000e+00> : vector<8x8xf32>
    %53 = tpu.matmul %48, %50, %cst_27 {dimension_numbers = #tpu.dot_dimension_numbers<[1], [1], [0], [0], [0, 0, 1, 0], [], []>} : vector<8x8xbf16>, vector<8x8xbf16>, vector<8x8xf32> -> vector<8x8xf32>
    %54 = arith.addf %53, %41 : vector<8x8xf32>
    %cst_28 = arith.constant dense<0xFF800000> : vector<8xf32>
    %55 = vector.multi_reduction <maximumf>, %54, %cst_28 [1] : vector<8x8xf32> to vector<8xf32>
    %56 = vector.shape_cast %55 : vector<8xf32> to vector<8x1xf32>
    %57 = vector.broadcast %56 : vector<8x1xf32> to vector<8x8xf32>
    %58 = arith.subf %54, %57 : vector<8x8xf32>
    %59 = math.exp %58 : vector<8x8xf32>
    %cst_29 = arith.constant dense<0.000000e+00> : vector<8xf32>
    %60 = vector.multi_reduction <add>, %59, %cst_29 [1] : vector<8x8xf32> to vector<8xf32>
    %61 = vector.shape_cast %60 : vector<8xf32> to vector<8x1xf32>
    %62 = tpu.reciprocal %61 {approx = true} : vector<8x1xf32> -> vector<8x1xf32>
    %63 = vector.broadcast %62 : vector<8x1xf32> to vector<8x8xf32>
    %64 = arith.mulf %59, %63 : vector<8x8xf32>
    %65 = arith.truncf %64 : vector<8x8xf32> to vector<8x8xbf16>
    %cst_30 = arith.constant dense<0.000000e+00> : vector<8x8xf32>
    %66 = tpu.matmul %65, %52, %cst_30 {dimension_numbers = #tpu.dot_dimension_numbers<[1], [0], [0], [1], [0, 0, 1, 1], [], []>} : vector<8x8xbf16>, vector<8x8xbf16>, vector<8x8xf32> -> vector<8x8xf32>
    %67 = arith.truncf %66 : vector<8x8xf32> to vector<8x8xbf16>
    %68 = vector.extract_strided_slice %43 {offsets = [0, 0], sizes = [8, 32], strides = [1, 1]} : vector<32x32xbf16> to vector<8x32xbf16>
    %cst_31 = arith.constant dense<0.000000e+00> : vector<8x32xf32>
    %69 = tpu.matmul %67, %68, %cst_31 {dimension_numbers = #tpu.dot_dimension_numbers<[1], [0], [0], [1], [0, 0, 1, 1], [], []>} : vector<8x8xbf16>, vector<8x32xbf16>, vector<8x32xf32> -> vector<8x32xf32>
    %70 = arith.addf %44, %69 : vector<8x32xf32>
    %71 = vector.extract_strided_slice %40 {offsets = [0, 8], sizes = [8, 8], strides = [1, 1]} : vector<8x96xf32> to vector<8x8xf32>
    %cst_32 = arith.constant 0.353553385 : f32
    %72 = vector.broadcast %cst_32 : f32 to vector<8x8xf32>
    %73 = arith.mulf %71, %72 : vector<8x8xf32>
    %74 = arith.truncf %73 : vector<8x8xf32> to vector<8x8xbf16>
    %75 = vector.extract_strided_slice %40 {offsets = [0, 40], sizes = [8, 8], strides = [1, 1]} : vector<8x96xf32> to vector<8x8xf32>
    %76 = arith.truncf %75 : vector<8x8xf32> to vector<8x8xbf16>
    %77 = vector.extract_strided_slice %40 {offsets = [0, 72], sizes = [8, 8], strides = [1, 1]} : vector<8x96xf32> to vector<8x8xf32>
    %78 = arith.truncf %77 : vector<8x8xf32> to vector<8x8xbf16>
    %cst_33 = arith.constant dense<0.000000e+00> : vector<8x8xf32>
    %79 = tpu.matmul %74, %76, %cst_33 {dimension_numbers = #tpu.dot_dimension_numbers<[1], [1], [0], [0], [0, 0, 1, 0], [], []>} : vector<8x8xbf16>, vector<8x8xbf16>, vector<8x8xf32> -> vector<8x8xf32>
    %80 = arith.addf %79, %41 : vector<8x8xf32>
    %cst_34 = arith.constant dense<0xFF800000> : vector<8xf32>
    %81 = vector.multi_reduction <maximumf>, %80, %cst_34 [1] : vector<8x8xf32> to vector<8xf32>
    %82 = vector.shape_cast %81 : vector<8xf32> to vector<8x1xf32>
    %83 = vector.broadcast %82 : vector<8x1xf32> to vector<8x8xf32>
    %84 = arith.subf %80, %83 : vector<8x8xf32>
    %85 = math.exp %84 : vector<8x8xf32>
    %cst_35 = arith.constant dense<0.000000e+00> : vector<8xf32>
    %86 = vector.multi_reduction <add>, %85, %cst_35 [1] : vector<8x8xf32> to vector<8xf32>
    %87 = vector.shape_cast %86 : vector<8xf32> to vector<8x1xf32>
    %88 = tpu.reciprocal %87 {approx = true} : vector<8x1xf32> -> vector<8x1xf32>
    %89 = vector.broadcast %88 : vector<8x1xf32> to vector<8x8xf32>
    %90 = arith.mulf %85, %89 : vector<8x8xf32>
    %91 = arith.truncf %90 : vector<8x8xf32> to vector<8x8xbf16>
    %cst_36 = arith.constant dense<0.000000e+00> : vector<8x8xf32>
    %92 = tpu.matmul %91, %78, %cst_36 {dimension_numbers = #tpu.dot_dimension_numbers<[1], [0], [0], [1], [0, 0, 1, 1], [], []>} : vector<8x8xbf16>, vector<8x8xbf16>, vector<8x8xf32> -> vector<8x8xf32>
    %93 = arith.truncf %92 : vector<8x8xf32> to vector<8x8xbf16>
    %94 = vector.extract_strided_slice %43 {offsets = [8, 0], sizes = [8, 32], strides = [1, 1]} : vector<32x32xbf16> to vector<8x32xbf16>
    %cst_37 = arith.constant dense<0.000000e+00> : vector<8x32xf32>
    %95 = tpu.matmul %93, %94, %cst_37 {dimension_numbers = #tpu.dot_dimension_numbers<[1], [0], [0], [1], [0, 0, 1, 1], [], []>} : vector<8x8xbf16>, vector<8x32xbf16>, vector<8x32xf32> -> vector<8x32xf32>
    %96 = arith.addf %70, %95 : vector<8x32xf32>
    %97 = vector.extract_strided_slice %40 {offsets = [0, 16], sizes = [8, 8], strides = [1, 1]} : vector<8x96xf32> to vector<8x8xf32>
    %cst_38 = arith.constant 0.353553385 : f32
    %98 = vector.broadcast %cst_38 : f32 to vector<8x8xf32>
    %99 = arith.mulf %97, %98 : vector<8x8xf32>
    %100 = arith.truncf %99 : vector<8x8xf32> to vector<8x8xbf16>
    %101 = vector.extract_strided_slice %40 {offsets = [0, 48], sizes = [8, 8], strides = [1, 1]} : vector<8x96xf32> to vector<8x8xf32>
    %102 = arith.truncf %101 : vector<8x8xf32> to vector<8x8xbf16>
    %103 = vector.extract_strided_slice %40 {offsets = [0, 80], sizes = [8, 8], strides = [1, 1]} : vector<8x96xf32> to vector<8x8xf32>
    %104 = arith.truncf %103 : vector<8x8xf32> to vector<8x8xbf16>
    %cst_39 = arith.constant dense<0.000000e+00> : vector<8x8xf32>
    %105 = tpu.matmul %100, %102, %cst_39 {dimension_numbers = #tpu.dot_dimension_numbers<[1], [1], [0], [0], [0, 0, 1, 0], [], []>} : vector<8x8xbf16>, vector<8x8xbf16>, vector<8x8xf32> -> vector<8x8xf32>
    %106 = arith.addf %105, %41 : vector<8x8xf32>
    %cst_40 = arith.constant dense<0xFF800000> : vector<8xf32>
    %107 = vector.multi_reduction <maximumf>, %106, %cst_40 [1] : vector<8x8xf32> to vector<8xf32>
    %108 = vector.shape_cast %107 : vector<8xf32> to vector<8x1xf32>
    %109 = vector.broadcast %108 : vector<8x1xf32> to vector<8x8xf32>
    %110 = arith.subf %106, %109 : vector<8x8xf32>
    %111 = math.exp %110 : vector<8x8xf32>
    %cst_41 = arith.constant dense<0.000000e+00> : vector<8xf32>
    %112 = vector.multi_reduction <add>, %111, %cst_41 [1] : vector<8x8xf32> to vector<8xf32>
    %113 = vector.shape_cast %112 : vector<8xf32> to vector<8x1xf32>
    %114 = tpu.reciprocal %113 {approx = true} : vector<8x1xf32> -> vector<8x1xf32>
    %115 = vector.broadcast %114 : vector<8x1xf32> to vector<8x8xf32>
    %116 = arith.mulf %111, %115 : vector<8x8xf32>
    %117 = arith.truncf %116 : vector<8x8xf32> to vector<8x8xbf16>
    %cst_42 = arith.constant dense<0.000000e+00> : vector<8x8xf32>
    %118 = tpu.matmul %117, %104, %cst_42 {dimension_numbers = #tpu.dot_dimension_numbers<[1], [0], [0], [1], [0, 0, 1, 1], [], []>} : vector<8x8xbf16>, vector<8x8xbf16>, vector<8x8xf32> -> vector<8x8xf32>
    %119 = arith.truncf %118 : vector<8x8xf32> to vector<8x8xbf16>
    %120 = vector.extract_strided_slice %43 {offsets = [16, 0], sizes = [8, 32], strides = [1, 1]} : vector<32x32xbf16> to vector<8x32xbf16>
    %cst_43 = arith.constant dense<0.000000e+00> : vector<8x32xf32>
    %121 = tpu.matmul %119, %120, %cst_43 {dimension_numbers = #tpu.dot_dimension_numbers<[1], [0], [0], [1], [0, 0, 1, 1], [], []>} : vector<8x8xbf16>, vector<8x32xbf16>, vector<8x32xf32> -> vector<8x32xf32>
    %122 = arith.addf %96, %121 : vector<8x32xf32>
    %123 = vector.extract_strided_slice %40 {offsets = [0, 24], sizes = [8, 8], strides = [1, 1]} : vector<8x96xf32> to vector<8x8xf32>
    %cst_44 = arith.constant 0.353553385 : f32
    %124 = vector.broadcast %cst_44 : f32 to vector<8x8xf32>
    %125 = arith.mulf %123, %124 : vector<8x8xf32>
    %126 = arith.truncf %125 : vector<8x8xf32> to vector<8x8xbf16>
    %127 = vector.extract_strided_slice %40 {offsets = [0, 56], sizes = [8, 8], strides = [1, 1]} : vector<8x96xf32> to vector<8x8xf32>
    %128 = arith.truncf %127 : vector<8x8xf32> to vector<8x8xbf16>
    %129 = vector.extract_strided_slice %40 {offsets = [0, 88], sizes = [8, 8], strides = [1, 1]} : vector<8x96xf32> to vector<8x8xf32>
    %130 = arith.truncf %129 : vector<8x8xf32> to vector<8x8xbf16>
    %cst_45 = arith.constant dense<0.000000e+00> : vector<8x8xf32>
    %131 = tpu.matmul %126, %128, %cst_45 {dimension_numbers = #tpu.dot_dimension_numbers<[1], [1], [0], [0], [0, 0, 1, 0], [], []>} : vector<8x8xbf16>, vector<8x8xbf16>, vector<8x8xf32> -> vector<8x8xf32>
    %132 = arith.addf %131, %41 : vector<8x8xf32>
    %cst_46 = arith.constant dense<0xFF800000> : vector<8xf32>
    %133 = vector.multi_reduction <maximumf>, %132, %cst_46 [1] : vector<8x8xf32> to vector<8xf32>
    %134 = vector.shape_cast %133 : vector<8xf32> to vector<8x1xf32>
    %135 = vector.broadcast %134 : vector<8x1xf32> to vector<8x8xf32>
    %136 = arith.subf %132, %135 : vector<8x8xf32>
    %137 = math.exp %136 : vector<8x8xf32>
    %cst_47 = arith.constant dense<0.000000e+00> : vector<8xf32>
    %138 = vector.multi_reduction <add>, %137, %cst_47 [1] : vector<8x8xf32> to vector<8xf32>
    %139 = vector.shape_cast %138 : vector<8xf32> to vector<8x1xf32>
    %140 = tpu.reciprocal %139 {approx = true} : vector<8x1xf32> -> vector<8x1xf32>
    %141 = vector.broadcast %140 : vector<8x1xf32> to vector<8x8xf32>
    %142 = arith.mulf %137, %141 : vector<8x8xf32>
    %143 = arith.truncf %142 : vector<8x8xf32> to vector<8x8xbf16>
    %cst_48 = arith.constant dense<0.000000e+00> : vector<8x8xf32>
    %144 = tpu.matmul %143, %130, %cst_48 {dimension_numbers = #tpu.dot_dimension_numbers<[1], [0], [0], [1], [0, 0, 1, 1], [], []>} : vector<8x8xbf16>, vector<8x8xbf16>, vector<8x8xf32> -> vector<8x8xf32>
    %145 = arith.truncf %144 : vector<8x8xf32> to vector<8x8xbf16>
    %146 = vector.extract_strided_slice %43 {offsets = [24, 0], sizes = [8, 32], strides = [1, 1]} : vector<32x32xbf16> to vector<8x32xbf16>
    %cst_49 = arith.constant dense<0.000000e+00> : vector<8x32xf32>
    %147 = tpu.matmul %145, %146, %cst_49 {dimension_numbers = #tpu.dot_dimension_numbers<[1], [0], [0], [1], [0, 0, 1, 1], [], []>} : vector<8x8xbf16>, vector<8x32xbf16>, vector<8x32xf32> -> vector<8x32xf32>
    %148 = arith.addf %122, %147 : vector<8x32xf32>
    %149 = arith.addf %4, %148 : vector<8x32xf32>
    %c0_50 = arith.constant 0 : index
    %c0_51 = arith.constant 0 : index
    %c0_52 = arith.constant 0 : index
    %150 = vector.load %arg9[%c0_50, %c0_51, %c0_52] : memref<1x1x32xf32, #tpu.memory_space<vmem>>, vector<1x1x32xf32>
    %151 = vector.shape_cast %150 : vector<1x1x32xf32> to vector<1x32xf32>
    %152 = vector.broadcast %151 : vector<1x32xf32> to vector<8x32xf32>
    %153 = arith.addf %149, %152 : vector<8x32xf32>
    %c0_53 = arith.constant 0 : index
    %c0_54 = arith.constant 0 : index
    %c0_55 = arith.constant 0 : index
    %154 = vector.load %arg10[%c0_53, %c0_54, %c0_55] : memref<1x1x32xf32, #tpu.memory_space<vmem>>, vector<1x1x32xf32>
    %155 = vector.shape_cast %154 : vector<1x1x32xf32> to vector<1x32xf32>
    %c0_56 = arith.constant 0 : index
    %c0_57 = arith.constant 0 : index
    %c0_58 = arith.constant 0 : index
    %156 = vector.load %arg11[%c0_56, %c0_57, %c0_58] : memref<1x1x32xf32, #tpu.memory_space<vmem>>, vector<1x1x32xf32>
    %157 = vector.shape_cast %156 : vector<1x1x32xf32> to vector<1x32xf32>
    %cst_59 = arith.constant dense<0.000000e+00> : vector<8xf32>
    %158 = vector.multi_reduction <add>, %153, %cst_59 [1] : vector<8x32xf32> to vector<8xf32>
    %159 = vector.shape_cast %158 : vector<8xf32> to vector<8x1xf32>
    %cst_60 = arith.constant 3.200000e+01 : f32
    %160 = vector.broadcast %cst_60 : f32 to vector<8x1xf32>
    %161 = arith.divf %159, %160 : vector<8x1xf32>
    %162 = vector.broadcast %161 : vector<8x1xf32> to vector<8x32xf32>
    %163 = arith.subf %153, %162 : vector<8x32xf32>
    %164 = vector.broadcast %161 : vector<8x1xf32> to vector<8x32xf32>
    %165 = arith.subf %153, %164 : vector<8x32xf32>
    %166 = arith.mulf %163, %165 : vector<8x32xf32>
    %cst_61 = arith.constant dense<0.000000e+00> : vector<8xf32>
    %167 = vector.multi_reduction <add>, %166, %cst_61 [1] : vector<8x32xf32> to vector<8xf32>
    %168 = vector.shape_cast %167 : vector<8xf32> to vector<8x1xf32>
    %cst_62 = arith.constant 3.200000e+01 : f32
    %169 = vector.broadcast %cst_62 : f32 to vector<8x1xf32>
    %170 = arith.divf %168, %169 : vector<8x1xf32>
    %171 = vector.broadcast %161 : vector<8x1xf32> to vector<8x32xf32>
    %172 = arith.subf %153, %171 : vector<8x32xf32>
    %cst_63 = arith.constant 9.99999974E-6 : f32
    %173 = vector.broadcast %cst_63 : f32 to vector<8x1xf32>
    %174 = arith.addf %170, %173 : vector<8x1xf32>
    %175 = math.rsqrt %174 : vector<8x1xf32>
    %176 = vector.broadcast %175 : vector<8x1xf32> to vector<8x32xf32>
    %177 = arith.mulf %172, %176 : vector<8x32xf32>
    %178 = vector.broadcast %155 : vector<1x32xf32> to vector<8x32xf32>
    %179 = arith.mulf %177, %178 : vector<8x32xf32>
    %180 = vector.broadcast %157 : vector<1x32xf32> to vector<8x32xf32>
    %181 = arith.addf %179, %180 : vector<8x32xf32>
    %182 = arith.truncf %181 : vector<8x32xf32> to vector<8x32xbf16>
    %cst_64 = arith.constant 0.000000e+00 : f32
    %183 = vector.broadcast %cst_64 : f32 to vector<8x32xf32>
    %c0_65 = arith.constant 0 : index
    %c0_66 = arith.constant 0 : index
    %c0_67 = arith.constant 0 : index
    %184 = vector.load %arg12[%c0_65, %c0_66, %c0_67] : memref<1x32x128xbf16, #tpu.memory_space<vmem>>, vector<1x32x128xbf16>
    %185 = vector.shape_cast %184 : vector<1x32x128xbf16> to vector<32x128xbf16>
    %cst_68 = arith.constant dense<0.000000e+00> : vector<8x128xf32>
    %186 = tpu.matmul %182, %185, %cst_68 {dimension_numbers = #tpu.dot_dimension_numbers<[1], [0], [0], [1], [0, 0, 1, 1], [], []>} : vector<8x32xbf16>, vector<32x128xbf16>, vector<8x128xf32> -> vector<8x128xf32>
    %c0_69 = arith.constant 0 : index
    %c0_70 = arith.constant 0 : index
    %c0_71 = arith.constant 0 : index
    %187 = vector.load %arg13[%c0_69, %c0_70, %c0_71] : memref<1x1x128xf32, #tpu.memory_space<vmem>>, vector<1x1x128xf32>
    %188 = vector.shape_cast %187 : vector<1x1x128xf32> to vector<1x128xf32>
    %189 = vector.broadcast %188 : vector<1x128xf32> to vector<8x128xf32>
    %190 = arith.addf %186, %189 : vector<8x128xf32>
    %cst_72 = arith.constant 5.000000e-01 : f32
    %191 = vector.broadcast %cst_72 : f32 to vector<8x128xf32>
    %192 = arith.mulf %191, %190 : vector<8x128xf32>
    %193 = arith.mulf %190, %190 : vector<8x128xf32>
    %194 = arith.mulf %193, %190 : vector<8x128xf32>
    %cst_73 = arith.constant 4.471500e-02 : f32
    %195 = vector.broadcast %cst_73 : f32 to vector<8x128xf32>
    %196 = arith.mulf %195, %194 : vector<8x128xf32>
    %197 = arith.addf %190, %196 : vector<8x128xf32>
    %cst_74 = arith.constant 0.797884583 : f32
    %198 = vector.broadcast %cst_74 : f32 to vector<8x128xf32>
    %199 = arith.mulf %198, %197 : vector<8x128xf32>
    %200 = math.tanh %199 : vector<8x128xf32>
    %cst_75 = arith.constant 1.000000e+00 : f32
    %201 = vector.broadcast %cst_75 : f32 to vector<8x128xf32>
    %202 = arith.addf %201, %200 : vector<8x128xf32>
    %203 = arith.mulf %192, %202 : vector<8x128xf32>
    %204 = arith.truncf %203 : vector<8x128xf32> to vector<8x128xbf16>
    %c0_76 = arith.constant 0 : index
    %c0_77 = arith.constant 0 : index
    %c0_78 = arith.constant 0 : index
    %205 = vector.load %arg14[%c0_76, %c0_77, %c0_78] : memref<1x128x32xbf16, #tpu.memory_space<vmem>>, vector<1x128x32xbf16>
    %206 = vector.shape_cast %205 : vector<1x128x32xbf16> to vector<128x32xbf16>
    %cst_79 = arith.constant dense<0.000000e+00> : vector<8x32xf32>
    %207 = tpu.matmul %204, %206, %cst_79 {dimension_numbers = #tpu.dot_dimension_numbers<[1], [0], [0], [1], [0, 0, 1, 1], [], []>} : vector<8x128xbf16>, vector<128x32xbf16>, vector<8x32xf32> -> vector<8x32xf32>
    %208 = arith.addf %183, %207 : vector<8x32xf32>
    %209 = arith.addf %153, %208 : vector<8x32xf32>
    %c0_80 = arith.constant 0 : index
    %c0_81 = arith.constant 0 : index
    %c0_82 = arith.constant 0 : index
    %210 = vector.load %arg15[%c0_80, %c0_81, %c0_82] : memref<1x1x32xf32, #tpu.memory_space<vmem>>, vector<1x1x32xf32>
    %211 = vector.shape_cast %210 : vector<1x1x32xf32> to vector<1x32xf32>
    %212 = vector.broadcast %211 : vector<1x32xf32> to vector<8x32xf32>
    %213 = arith.addf %209, %212 : vector<8x32xf32>
    %c0_83 = arith.constant 0 : index
    %c0_84 = arith.constant 0 : index
    %c0_85 = arith.constant 0 : index
    %214 = vector.load %arg16[%c0_83, %c0_84, %c0_85] : memref<1x8x32xf32, #tpu.memory_space<vmem>>, vector<1x8x32xf32>
    %215 = vector.shape_cast %214 : vector<1x8x32xf32> to vector<8x32xf32>
    %216 = vector.shape_cast %213 : vector<8x32xf32> to vector<1x8x32xf32>
    tpu.vector_store %arg16[%c0_83, %c0_84, %c0_85], %216 {strides = array<i32>} : memref<1x8x32xf32, #tpu.memory_space<vmem>>, vector<1x8x32xf32>,
    return
  }
  func.func @transform_0(%arg0: i32, %arg1: i32) -> (i32, i32, i32) {
    %c0_i32 = arith.constant 0 : i32
    %c0_i32_0 = arith.constant 0 : i32
    %c0_i32_1 = arith.constant 0 : i32
    return %arg0, %c0_i32, %c0_i32_0 : i32, i32, i32
  }
  func.func @transform_1(%arg0: i32, %arg1: i32) -> (i32, i32) {
    %c0_i32 = arith.constant 0 : i32
    %c0_i32_0 = arith.constant 0 : i32
    %c0_i32_1 = arith.constant 0 : i32
    return %c0_i32, %c0_i32_0 : i32, i32
  }
  func.func @transform_2(%arg0: i32, %arg1: i32) -> (i32, i32, i32) {
    %c0_i32 = arith.constant 0 : i32
    %c0_i32_0 = arith.constant 0 : i32
    %c0_i32_1 = arith.constant 0 : i32
    return %arg1, %c0_i32, %c0_i32_0 : i32, i32, i32
  }
  func.func @transform_3(%arg0: i32, %arg1: i32) -> (i32, i32, i32) {
    %c0_i32 = arith.constant 0 : i32
    %c0_i32_0 = arith.constant 0 : i32
    %c0_i32_1 = arith.constant 0 : i32
    return %arg1, %c0_i32, %c0_i32_0 : i32, i32, i32
  }
  func.func @transform_4(%arg0: i32, %arg1: i32) -> (i32, i32, i32) {
    %c0_i32 = arith.constant 0 : i32
    %c0_i32_0 = arith.constant 0 : i32
    %c0_i32_1 = arith.constant 0 : i32
    return %arg1, %c0_i32, %c0_i32_0 : i32, i32, i32
  }
  func.func @transform_5(%arg0: i32, %arg1: i32) -> (i32, i32, i32) {
    %c0_i32 = arith.constant 0 : i32
    %c0_i32_0 = arith.constant 0 : i32
    %c0_i32_1 = arith.constant 0 : i32
    return %arg1, %c0_i32, %c0_i32_0 : i32, i32, i32
  }
  func.func @transform_6(%arg0: i32, %arg1: i32) -> (i32, i32, i32) {
    %c0_i32 = arith.constant 0 : i32
    %c0_i32_0 = arith.constant 0 : i32
    %c0_i32_1 = arith.constant 0 : i32
    return %arg1, %c0_i32, %c0_i32_0 : i32, i32, i32
  }
  func.func @transform_7(%arg0: i32, %arg1: i32) -> (i32, i32, i32) {
    %c0_i32 = arith.constant 0 : i32
    %c0_i32_0 = arith.constant 0 : i32
    %c0_i32_1 = arith.constant 0 : i32
    return %arg1, %c0_i32, %c0_i32_0 : i32, i32, i32
  }
  func.func @transform_8(%arg0: i32, %arg1: i32) -> (i32, i32, i32) {
    %c0_i32 = arith.constant 0 : i32
    %c0_i32_0 = arith.constant 0 : i32
    %c0_i32_1 = arith.constant 0 : i32
    return %arg1, %c0_i32, %c0_i32_0 : i32, i32, i32
  }
  func.func @transform_9(%arg0: i32, %arg1: i32) -> (i32, i32, i32) {
    %c0_i32 = arith.constant 0 : i32
    %c0_i32_0 = arith.constant 0 : i32
    %c0_i32_1 = arith.constant 0 : i32
    return %arg1, %c0_i32, %c0_i32_0 : i32, i32, i32
  }
  func.func @transform_10(%arg0: i32, %arg1: i32) -> (i32, i32, i32) {
    %c0_i32 = arith.constant 0 : i32
    %c0_i32_0 = arith.constant 0 : i32
    %c0_i32_1 = arith.constant 0 : i32
    return %arg1, %c0_i32, %c0_i32_0 : i32, i32, i32
  }
  func.func @transform_11(%arg0: i32, %arg1: i32) -> (i32, i32, i32) {
    %c0_i32 = arith.constant 0 : i32
    %c0_i32_0 = arith.constant 0 : i32
    %c0_i32_1 = arith.constant 0 : i32
    return %arg1, %c0_i32, %c0_i32_0 : i32, i32, i32
  }
  func.func @transform_12(%arg0: i32, %arg1: i32) -> (i32, i32, i32) {
    %c0_i32 = arith.constant 0 : i32
    %c0_i32_0 = arith.constant 0 : i32
    %c0_i32_1 = arith.constant 0 : i32
    return %arg1, %c0_i32, %c0_i32_0 : i32, i32, i32
  }
  func.func @transform_13(%arg0: i32, %arg1: i32) -> (i32, i32, i32) {
    %c0_i32 = arith.constant 0 : i32
    %c0_i32_0 = arith.constant 0 : i32
    %c0_i32_1 = arith.constant 0 : i32
    return %arg1, %c0_i32, %c0_i32_0 : i32, i32, i32
  }
  func.func @transform_14(%arg0: i32, %arg1: i32) -> (i32, i32, i32) {
    %c0_i32 = arith.constant 0 : i32
    %c0_i32_0 = arith.constant 0 : i32
    %c0_i32_1 = arith.constant 0 : i32
    return %arg0, %c0_i32, %c0_i32_0 : i32, i32, i32
  }
}

</mosaic_0001>

<llo_original>
// kernel: _jit_forward.1
$region0: #{_jit_forward.1}
  #allocation0 [shape = 'u32[]', space=smem, size = 0x4, offset = 0x4, fixed_abs, tag = 'smem constant byte address 0x4 - core index']
  #allocation1 [shape = 'u32[144,128]{1,0:T(1,128)}', space=vmem, size = 0x12000, scoped, tag = 'internal scratch']
  %s0 = inlined_call_operand.vmem [shape: f32[2,8,32], index: 0, kind: input, shape index: {}]
  %s1 = inlined_call_operand.vmem [shape: f32[8,8], index: 1, kind: input, shape index: {}]
  %s2 = inlined_call_operand.vmem [shape: f32[2,1,32], index: 2, kind: input, shape index: {}]
  %s3 = inlined_call_operand.vmem [shape: f32[2,1,32], index: 3, kind: input, shape index: {}]
  %s4 = inlined_call_operand.vmem [shape: bf16[2,32,96], index: 4, kind: input, shape index: {}]
  %s5 = inlined_call_operand.vmem [shape: f32[2,1,96], index: 5, kind: input, shape index: {}]
  %s6 = inlined_call_operand.vmem [shape: bf16[2,32,32], index: 6, kind: input, shape index: {}]
  %s7 = inlined_call_operand.vmem [shape: f32[2,1,32], index: 7, kind: input, shape index: {}]
  %s8 = inlined_call_operand.vmem [shape: f32[2,1,32], index: 8, kind: input, shape index: {}]
  %s9 = inlined_call_operand.vmem [shape: f32[2,1,32], index: 9, kind: input, shape index: {}]
  %s10 = inlined_call_operand.vmem [shape: bf16[2,32,128], index: 10, kind: input, shape index: {}]
  %s11 = inlined_call_operand.vmem [shape: f32[2,1,128], index: 11, kind: input, shape index: {}]
  %s12 = inlined_call_operand.vmem [shape: bf16[2,128,32], index: 12, kind: input, shape index: {}]
  %s13 = inlined_call_operand.vmem [shape: f32[2,1,32], index: 13, kind: input, shape index: {}]
  %s14 = inlined_call_operand.vmem [shape: f32[2,8,32], index: 14, kind: output, shape index: {}]
  %s15 = sld [smem:[#allocation0]]
  $region93: #{_jit_forward.1} parent=0
    _
  %s17 = ssub.s32 1, %s15
  %s18 = scalar_select 0, %s17, %s15
  loop: start=0, step=1, limit=6
  $region2: #{_jit_forward.1} parent=0 // loop_pre_header
    _
  $region3: #{_jit_forward.1} parent=0 // loop_header
    %s20 = sphi 0, %s24
    %p21 = scmp.ge.s32.totalorder %s20, 6
    %s27 = sphi 0, %s39
    %s28 = sphi 0, %s35
    %s29 = sphi 0, %s27
    %s30 = sphi 0, %s28
    %s31 = sphi 0, %s29
    %s32 = sphi 0, %s30
    %s42 = sphi 0, %s44
    %s45 = sphi 0, %s42
    %s46 = sphi 0, %s45
    %s62 = sphi 0, %s46
    %s66 = sphi 0, %s66
    %s68 = sphi 0, %s66
    %s69 = sphi 0, %s68
    %s83 = sphi 0, %s69
    %s89 = sphi 0, %s91
    %s92 = sphi 0, %s89
    %s93 = sphi 0, %s92
    %s109 = sphi 0, %s93
    %s115 = sphi 0, %s117
    %s118 = sphi 0, %s115
    %s119 = sphi 0, %s118
    %s135 = sphi 0, %s119
    %s141 = sphi 0, %s143
    %s144 = sphi 0, %s141
    %s145 = sphi 0, %s144
    %s161 = sphi 0, %s145
    %s167 = sphi 0, %s169
    %s170 = sphi 0, %s167
    %s171 = sphi 0, %s170
    %s187 = sphi 0, %s171
    %s193 = sphi 0, %s195
    %s196 = sphi 0, %s193
    %s197 = sphi 0, %s196
    %s213 = sphi 0, %s197
    %s219 = sphi 0, %s221
    %s222 = sphi 0, %s219
    %s223 = sphi 0, %s222
    %s239 = sphi 0, %s223
    %s245 = sphi 0, %s247
    %s248 = sphi 0, %s245
    %s249 = sphi 0, %s248
    %s265 = sphi 0, %s249
    %s271 = sphi 0, %s273
    %s274 = sphi 0, %s271
    %s275 = sphi 0, %s274
    %s291 = sphi 0, %s275
    %s297 = sphi 0, %s299
    %s300 = sphi 0, %s297
    %s301 = sphi 0, %s300
    %s317 = sphi 0, %s301
    %s323 = sphi 0, %s325
    %s326 = sphi 0, %s323
    %s327 = sphi 0, %s326
    %s343 = sphi 0, %s327
    %s349 = sphi 0, %s351
    %s352 = sphi 0, %s349
    %s353 = sphi 0, %s352
    %s369 = sphi 0, %s353
    %s375 = sphi 0, %s377
    %s378 = sphi 0, %s375
    %s379 = sphi 0, %s378
    %s395 = sphi 0, %s379
    %s401 = sphi 0, %s403
    %s404 = sphi 0, %s401
    %s405 = sphi 0, %s404
    %s421 = sphi 0, %s405
  $region4: #{_jit_forward.1} parent=0 // loop_header_branch
    %23 = sbr.rel (%p21) target = $region8
  $region5: #{_jit_forward.1} parent=0 // loop_body
    %s25 = ssub.s32 %s20, 1
    %s26 = ssub.s32 %s20, 2
    %s33 = sadd.s32 1, %s28
    %p34 = scmp.ge.s32.totalorder %s33, 2
    %s35 = scalar_select %p34, 0, %s33
    %s36 = sadd.s32 1, %s27
    %s37 = scalar_select %p34, %s36, %s27
    %p38 = scmp.ge.s32.totalorder %s37, 2
    %s39 = scalar_select %p38, 0, %s37
    %s40 = ssub.s32 %s27, %s39
    %p41 = scmp.eq.s32.totalorder %s40, 0
    %s43 = sadd.s32 %s42, 1
    %s44 = scalar_select %p41, %s42, %s43
    %p47 = pneg %p41
    %p48 = scmp.eq.s32.totalorder %s20, 3
    %p49 = por %p47, %p48
    %p50 = scmp.ne.s32.totalorder %s42, %s45
    %p51 = scmp.eq.s32.totalorder %s20, 0
    %p52 = por %p50, %p51
    %p53 = scmp.ne.s32.totalorder %s42, %s45
    %p54 = scmp.eq.s32.totalorder %s25, 3
    %p55 = por %p53, %p54
    %p56 = scmp.ne.s32.totalorder %s45, %s46
    %p57 = scmp.eq.s32.totalorder %s25, 0
    %p58 = por %p56, %p57
    %p59 = scmp.ne.s32.totalorder %s45, %s46
    %p60 = scmp.eq.s32.totalorder %s26, 3
    %p61 = por %p59, %p60
    %p63 = scmp.ne.s32.totalorder %s46, %s62
    %p64 = scmp.eq.s32.totalorder %s26, 0
    %p65 = por %p63, %p64
    %s67 = sadd.s32 %s66, 1
    %p70 = scmp.eq.s32.totalorder %s20, 3
    %p71 = scmp.ne.s32.totalorder %s66, %s68
    %p72 = scmp.eq.s32.totalorder %s20, 0
    %p73 = por %p71, %p72
    %p74 = scmp.ne.s32.totalorder %s66, %s68
    %p75 = scmp.eq.s32.totalorder %s25, 3
    %p76 = por %p74, %p75
    %p77 = scmp.ne.s32.totalorder %s68, %s69
    %p78 = scmp.eq.s32.totalorder %s25, 0
    %p79 = por %p77, %p78
    %p80 = scmp.ne.s32.totalorder %s68, %s69
    %p81 = scmp.eq.s32.totalorder %s26, 3
    %p82 = por %p80, %p81
    %p84 = scmp.ne.s32.totalorder %s69, %s83
    %p85 = scmp.eq.s32.totalorder %s26, 0
    %p86 = por %p84, %p85
    %s87 = ssub.s32 %s28, %s35
    %p88 = scmp.eq.s32.totalorder %s87, 0
    %s90 = sadd.s32 %s89, 1
    %s91 = scalar_select %p88, %s89, %s90
    %p94 = pneg %p88
    %p95 = scmp.eq.s32.totalorder %s20, 3
    %p96 = por %p94, %p95
    %p97 = scmp.ne.s32.totalorder %s89, %s92
    %p98 = scmp.eq.s32.totalorder %s20, 0
    %p99 = por %p97, %p98
    %p100 = scmp.ne.s32.totalorder %s89, %s92
    %p101 = scmp.eq.s32.totalorder %s25, 3
    %p102 = por %p100, %p101
    %p103 = scmp.ne.s32.totalorder %s92, %s93
    %p104 = scmp.eq.s32.totalorder %s25, 0
    %p105 = por %p103, %p104
    %p106 = scmp.ne.s32.totalorder %s92, %s93
    %p107 = scmp.eq.s32.totalorder %s26, 3
    %p108 = por %p106, %p107
    %p110 = scmp.ne.s32.totalorder %s93, %s109
    %p111 = scmp.eq.s32.totalorder %s26, 0
    %p112 = por %p110, %p111
    %s113 = ssub.s32 %s28, %s35
    %p114 = scmp.eq.s32.totalorder %s113, 0
    %s116 = sadd.s32 %s115, 1
    %s117 = scalar_select %p114, %s115, %s116
    %p120 = pneg %p114
    %p121 = scmp.eq.s32.totalorder %s20, 3
    %p122 = por %p120, %p121
    %p123 = scmp.ne.s32.totalorder %s115, %s118
    %p124 = scmp.eq.s32.totalorder %s20, 0
    %p125 = por %p123, %p124
    %p126 = scmp.ne.s32.totalorder %s115, %s118
    %p127 = scmp.eq.s32.totalorder %s25, 3
    %p128 = por %p126, %p127
    %p129 = scmp.ne.s32.totalorder %s118, %s119
    %p130 = scmp.eq.s32.totalorder %s25, 0
    %p131 = por %p129, %p130
    %p132 = scmp.ne.s32.totalorder %s118, %s119
    %p133 = scmp.eq.s32.totalorder %s26, 3
    %p134 = por %p132, %p133
    %p136 = scmp.ne.s32.totalorder %s119, %s135
    %p137 = scmp.eq.s32.totalorder %s26, 0
    %p138 = por %p136, %p137
    %s139 = ssub.s32 %s28, %s35
    %p140 = scmp.eq.s32.totalorder %s139, 0
    %s142 = sadd.s32 %s141, 1
    %s143 = scalar_select %p140, %s141, %s142
    %p146 = pneg %p140
    %p147 = scmp.eq.s32.totalorder %s20, 3
    %p148 = por %p146, %p147
    %p149 = scmp.ne.s32.totalorder %s141, %s144
    %p150 = scmp.eq.s32.totalorder %s20, 0
    %p151 = por %p149, %p150
    %p152 = scmp.ne.s32.totalorder %s141, %s144
    %p153 = scmp.eq.s32.totalorder %s25, 3
    %p154 = por %p152, %p153
    %p155 = scmp.ne.s32.totalorder %s144, %s145
    %p156 = scmp.eq.s32.totalorder %s25, 0
    %p157 = por %p155, %p156
    %p158 = scmp.ne.s32.totalorder %s144, %s145
    %p159 = scmp.eq.s32.totalorder %s26, 3
    %p160 = por %p158, %p159
    %p162 = scmp.ne.s32.totalorder %s145, %s161
    %p163 = scmp.eq.s32.totalorder %s26, 0
    %p164 = por %p162, %p163
    %s165 = ssub.s32 %s28, %s35
    %p166 = scmp.eq.s32.totalorder %s165, 0
    %s168 = sadd.s32 %s167, 1
    %s169 = scalar_select %p166, %s167, %s168
    %p172 = pneg %p166
    %p173 = scmp.eq.s32.totalorder %s20, 3
    %p174 = por %p172, %p173
    %p175 = scmp.ne.s32.totalorder %s167, %s170
    %p176 = scmp.eq.s32.totalorder %s20, 0
    %p177 = por %p175, %p176
    %p178 = scmp.ne.s32.totalorder %s167, %s170
    %p179 = scmp.eq.s32.totalorder %s25, 3
    %p180 = por %p178, %p179
    %p181 = scmp.ne.s32.totalorder %s170, %s171
    %p182 = scmp.eq.s32.totalorder %s25, 0
    %p183 = por %p181, %p182
    %p184 = scmp.ne.s32.totalorder %s170, %s171
    %p185 = scmp.eq.s32.totalorder %s26, 3
    %p186 = por %p184, %p185
    %p188 = scmp.ne.s32.totalorder %s171, %s187
    %p189 = scmp.eq.s32.totalorder %s26, 0
    %p190 = por %p188, %p189
    %s191 = ssub.s32 %s28, %s35
    %p192 = scmp.eq.s32.totalorder %s191, 0
    %s194 = sadd.s32 %s193, 1
    %s195 = scalar_select %p192, %s193, %s194
    %p198 = pneg %p192
    %p199 = scmp.eq.s32.totalorder %s20, 3
    %p200 = por %p198, %p199
    %p201 = scmp.ne.s32.totalorder %s193, %s196
    %p202 = scmp.eq.s32.totalorder %s20, 0
    %p203 = por %p201, %p202
    %p204 = scmp.ne.s32.totalorder %s193, %s196
    %p205 = scmp.eq.s32.totalorder %s25, 3
    %p206 = por %p204, %p205
    %p207 = scmp.ne.s32.totalorder %s196, %s197
    %p208 = scmp.eq.s32.totalorder %s25, 0
    %p209 = por %p207, %p208
    %p210 = scmp.ne.s32.totalorder %s196, %s197
    %p211 = scmp.eq.s32.totalorder %s26, 3
    %p212 = por %p210, %p211
    %p214 = scmp.ne.s32.totalorder %s197, %s213
    %p215 = scmp.eq.s32.totalorder %s26, 0
    %p216 = por %p214, %p215
    %s217 = ssub.s32 %s28, %s35
    %p218 = scmp.eq.s32.totalorder %s217, 0
    %s220 = sadd.s32 %s219, 1
    %s221 = scalar_select %p218, %s219, %s220
    %p224 = pneg %p218
    %p225 = scmp.eq.s32.totalorder %s20, 3
    %p226 = por %p224, %p225
    %p227 = scmp.ne.s32.totalorder %s219, %s222
    %p228 = scmp.eq.s32.totalorder %s20, 0
    %p229 = por %p227, %p228
    %p230 = scmp.ne.s32.totalorder %s219, %s222
    %p231 = scmp.eq.s32.totalorder %s25, 3
    %p232 = por %p230, %p231
    %p233 = scmp.ne.s32.totalorder %s222, %s223
    %p234 = scmp.eq.s32.totalorder %s25, 0
    %p235 = por %p233, %p234
    %p236 = scmp.ne.s32.totalorder %s222, %s223
    %p237 = scmp.eq.s32.totalorder %s26, 3
    %p238 = por %p236, %p237
    %p240 = scmp.ne.s32.totalorder %s223, %s239
    %p241 = scmp.eq.s32.totalorder %s26, 0
    %p242 = por %p240, %p241
    %s243 = ssub.s32 %s28, %s35
    %p244 = scmp.eq.s32.totalorder %s243, 0
    %s246 = sadd.s32 %s245, 1
    %s247 = scalar_select %p244, %s245, %s246
    %p250 = pneg %p244
    %p251 = scmp.eq.s32.totalorder %s20, 3
    %p252 = por %p250, %p251
    %p253 = scmp.ne.s32.totalorder %s245, %s248
    %p254 = scmp.eq.s32.totalorder %s20, 0
    %p255 = por %p253, %p254
    %p256 = scmp.ne.s32.totalorder %s245, %s248
    %p257 = scmp.eq.s32.totalorder %s25, 3
    %p258 = por %p256, %p257
    %p259 = scmp.ne.s32.totalorder %s248, %s249
    %p260 = scmp.eq.s32.totalorder %s25, 0
    %p261 = por %p259, %p260
    %p262 = scmp.ne.s32.totalorder %s248, %s249
    %p263 = scmp.eq.s32.totalorder %s26, 3
    %p264 = por %p262, %p263
    %p266 = scmp.ne.s32.totalorder %s249, %s265
    %p267 = scmp.eq.s32.totalorder %s26, 0
    %p268 = por %p266, %p267
    %s269 = ssub.s32 %s28, %s35
    %p270 = scmp.eq.s32.totalorder %s269, 0
    %s272 = sadd.s32 %s271, 1
    %s273 = scalar_select %p270, %s271, %s272
    %p276 = pneg %p270
    %p277 = scmp.eq.s32.totalorder %s20, 3
    %p278 = por %p276, %p277
    %p279 = scmp.ne.s32.totalorder %s271, %s274
    %p280 = scmp.eq.s32.totalorder %s20, 0
    %p281 = por %p279, %p280
    %p282 = scmp.ne.s32.totalorder %s271, %s274
    %p283 = scmp.eq.s32.totalorder %s25, 3
    %p284 = por %p282, %p283
    %p285 = scmp.ne.s32.totalorder %s274, %s275
    %p286 = scmp.eq.s32.totalorder %s25, 0
    %p287 = por %p285, %p286
    %p288 = scmp.ne.s32.totalorder %s274, %s275
    %p289 = scmp.eq.s32.totalorder %s26, 3
    %p290 = por %p288, %p289
    %p292 = scmp.ne.s32.totalorder %s275, %s291
    %p293 = scmp.eq.s32.totalorder %s26, 0
    %p294 = por %p292, %p293
    %s295 = ssub.s32 %s28, %s35
    %p296 = scmp.eq.s32.totalorder %s295, 0
    %s298 = sadd.s32 %s297, 1
    %s299 = scalar_select %p296, %s297, %s298
    %p302 = pneg %p296
    %p303 = scmp.eq.s32.totalorder %s20, 3
    %p304 = por %p302, %p303
    %p305 = scmp.ne.s32.totalorder %s297, %s300
    %p306 = scmp.eq.s32.totalorder %s20, 0
    %p307 = por %p305, %p306
    %p308 = scmp.ne.s32.totalorder %s297, %s300
    %p309 = scmp.eq.s32.totalorder %s25, 3
    %p310 = por %p308, %p309
    %p311 = scmp.ne.s32.totalorder %s300, %s301
    %p312 = scmp.eq.s32.totalorder %s25, 0
    %p313 = por %p311, %p312
    %p314 = scmp.ne.s32.totalorder %s300, %s301
    %p315 = scmp.eq.s32.totalorder %s26, 3
    %p316 = por %p314, %p315
    %p318 = scmp.ne.s32.totalorder %s301, %s317
    %p319 = scmp.eq.s32.totalorder %s26, 0
    %p320 = por %p318, %p319
    %s321 = ssub.s32 %s28, %s35
    %p322 = scmp.eq.s32.totalorder %s321, 0
    %s324 = sadd.s32 %s323, 1
    %s325 = scalar_select %p322, %s323, %s324
    %p328 = pneg %p322
    %p329 = scmp.eq.s32.totalorder %s20, 3
    %p330 = por %p328, %p329
    %p331 = scmp.ne.s32.totalorder %s323, %s326
    %p332 = scmp.eq.s32.totalorder %s20, 0
    %p333 = por %p331, %p332
    %p334 = scmp.ne.s32.totalorder %s323, %s326
    %p335 = scmp.eq.s32.totalorder %s25, 3
    %p336 = por %p334, %p335
    %p337 = scmp.ne.s32.totalorder %s326, %s327
    %p338 = scmp.eq.s32.totalorder %s25, 0
    %p339 = por %p337, %p338
    %p340 = scmp.ne.s32.totalorder %s326, %s327
    %p341 = scmp.eq.s32.totalorder %s26, 3
    %p342 = por %p340, %p341
    %p344 = scmp.ne.s32.totalorder %s327, %s343
    %p345 = scmp.eq.s32.totalorder %s26, 0
    %p346 = por %p344, %p345
    %s347 = ssub.s32 %s28, %s35
    %p348 = scmp.eq.s32.totalorder %s347, 0
    %s350 = sadd.s32 %s349, 1
    %s351 = scalar_select %p348, %s349, %s350
    %p354 = pneg %p348
    %p355 = scmp.eq.s32.totalorder %s20, 3
    %p356 = por %p354, %p355
    %p357 = scmp.ne.s32.totalorder %s349, %s352
    %p358 = scmp.eq.s32.totalorder %s20, 0
    %p359 = por %p357, %p358
    %p360 = scmp.ne.s32.totalorder %s349, %s352
    %p361 = scmp.eq.s32.totalorder %s25, 3
    %p362 = por %p360, %p361
    %p363 = scmp.ne.s32.totalorder %s352, %s353
    %p364 = scmp.eq.s32.totalorder %s25, 0
    %p365 = por %p363, %p364
    %p366 = scmp.ne.s32.totalorder %s352, %s353
    %p367 = scmp.eq.s32.totalorder %s26, 3
    %p368 = por %p366, %p367
    %p370 = scmp.ne.s32.totalorder %s353, %s369
    %p371 = scmp.eq.s32.totalorder %s26, 0
    %p372 = por %p370, %p371
    %s373 = ssub.s32 %s28, %s35
    %p374 = scmp.eq.s32.totalorder %s373, 0
    %s376 = sadd.s32 %s375, 1
    %s377 = scalar_select %p374, %s375, %s376
    %p380 = pneg %p374
    %p381 = scmp.eq.s32.totalorder %s20, 3
    %p382 = por %p380, %p381
    %p383 = scmp.ne.s32.totalorder %s375, %s378
    %p384 = scmp.eq.s32.totalorder %s20, 0
    %p385 = por %p383, %p384
    %p386 = scmp.ne.s32.totalorder %s375, %s378
    %p387 = scmp.eq.s32.totalorder %s25, 3
    %p388 = por %p386, %p387
    %p389 = scmp.ne.s32.totalorder %s378, %s379
    %p390 = scmp.eq.s32.totalorder %s25, 0
    %p391 = por %p389, %p390
    %p392 = scmp.ne.s32.totalorder %s378, %s379
    %p393 = scmp.eq.s32.totalorder %s26, 3
    %p394 = por %p392, %p393
    %p396 = scmp.ne.s32.totalorder %s379, %s395
    %p397 = scmp.eq.s32.totalorder %s26, 0
    %p398 = por %p396, %p397
    %s399 = ssub.s32 %s27, %s39
    %p400 = scmp.eq.s32.totalorder %s399, 0
    %s402 = sadd.s32 %s401, 1
    %s403 = scalar_select %p400, %s401, %s402
    %p406 = pneg %p400
    %p407 = scmp.eq.s32.totalorder %s20, 3
    %p408 = por %p406, %p407
    %p409 = scmp.ne.s32.totalorder %s401, %s404
    %p410 = scmp.eq.s32.totalorder %s20, 0
    %p411 = por %p409, %p410
    %p412 = scmp.ne.s32.totalorder %s401, %s404
    %p413 = scmp.eq.s32.totalorder %s25, 3
    %p414 = por %p412, %p413
    %p415 = scmp.ne.s32.totalorder %s404, %s405
    %p416 = scmp.eq.s32.totalorder %s25, 0
    %p417 = por %p415, %p416
    %p418 = scmp.ne.s32.totalorder %s404, %s405
    %p419 = scmp.eq.s32.totalorder %s26, 3
    %p420 = por %p418, %p419
    %p422 = scmp.ne.s32.totalorder %s405, %s421
    %p423 = scmp.eq.s32.totalorder %s26, 0
    %p424 = por %p422, %p423
    %p425 = scmp.le.s32.totalorder 1, %s20
    %p426 = scmp.lt.s32.totalorder %s20, 5
    %p427 = pnand %p425, %p426
    %p428 = pneg %p427
    // Predicated region
    $region9: #{_jit_forward.1} parent=5 // pred_check
      _
    $region10: #{_jit_forward.1} parent=5 // pred_check_branch
      %430 = sbr.rel (%p427) target = $region12
    $region11: #{_jit_forward.1} parent=5 // pred_region
      %s431 = ssub.s32 %s20, 1
      // Predicated region
      $region13: #{_jit_forward.1} parent=11 // pred_check
        %p432 = pneg %p79
      $region14: #{_jit_forward.1} parent=11 // pred_check_branch
        %434 = sbr.rel (%p432) target = $region16
      $region15: #{_jit_forward.1} parent=11 // pred_region
        _
      $region16: #{_jit_forward.1} parent=11 // pred_fallthru
        _
    $region12: #{_jit_forward.1} parent=5 // pred_fallthru
      _
    %p435 = scmp.lt.s32.totalorder %s20, 4
    // Predicated region
    $region17: #{_jit_forward.1} parent=5 // pred_check
      %p436 = pneg %p435
    $region18: #{_jit_forward.1} parent=5 // pred_check_branch
      %438 = sbr.rel (%p436) target = $region20
    $region19: #{_jit_forward.1} parent=5 // pred_region
      // Predicated region
      $region21: #{_jit_forward.1} parent=19 // pred_check
        %p439 = pneg %p52
      $region22: #{_jit_forward.1} parent=19 // pred_check_branch
        %441 = sbr.rel (%p439) target = $region24
      $region23: #{_jit_forward.1} parent=19 // pred_region
        %p442 = scmp.lt.s32.totalorder %s27, 1
        %s443 = scalar_select %p442, %s27, 1
        %s444 = smul.addr %s443, 8
        %s445 = scalar_lea.vmem %s0, %s444
      $region24: #{_jit_forward.1} parent=19 // pred_fallthru
        _
      // Predicated region
      $region25: #{_jit_forward.1} parent=19 // pred_check
        %p446 = pneg %p99
      $region26: #{_jit_forward.1} parent=19 // pred_check_branch
        %448 = sbr.rel (%p446) target = $region28
      $region27: #{_jit_forward.1} parent=19 // pred_region
        %p449 = scmp.lt.s32.totalorder %s28, 1
        %s450 = scalar_select %p449, %s28, 1
        %s451 = scalar_lea.vmem %s2, %s450
      $region28: #{_jit_forward.1} parent=19 // pred_fallthru
        _
      // Predicated region
      $region29: #{_jit_forward.1} parent=19 // pred_check
        %p452 = pneg %p125
      $region30: #{_jit_forward.1} parent=19 // pred_check_branch
        %454 = sbr.rel (%p452) target = $region32
      $region31: #{_jit_forward.1} parent=19 // pred_region
        %p455 = scmp.lt.s32.totalorder %s28, 1
        %s456 = scalar_select %p455, %s28, 1
        %s457 = scalar_lea.vmem %s3, %s456
      $region32: #{_jit_forward.1} parent=19 // pred_fallthru
        _
      // Predicated region
      $region33: #{_jit_forward.1} parent=19 // pred_check
        %p458 = pneg %p151
      $region34: #{_jit_forward.1} parent=19 // pred_check_branch
        %460 = sbr.rel (%p458) target = $region36
      $region35: #{_jit_forward.1} parent=19 // pred_region
        %p461 = scmp.lt.s32.totalorder %s28, 1
        %s462 = scalar_select %p461, %s28, 1
        %s463 = smul.addr %s462, 4
        %s464 = smul.addr %s463, 4
        %s465 = scalar_lea.vmem %s4, %s464
      $region36: #{_jit_forward.1} parent=19 // pred_fallthru
        _
      // Predicated region
      $region37: #{_jit_forward.1} parent=19 // pred_check
        %p466 = pneg %p177
      $region38: #{_jit_forward.1} parent=19 // pred_check_branch
        %468 = sbr.rel (%p466) target = $region40
      $region39: #{_jit_forward.1} parent=19 // pred_region
        %p469 = scmp.lt.s32.totalorder %s28, 1
        %s470 = scalar_select %p469, %s28, 1
        %s471 = scalar_lea.vmem %s5, %s470
      $region40: #{_jit_forward.1} parent=19 // pred_fallthru
        _
      // Predicated region
      $region41: #{_jit_forward.1} parent=19 // pred_check
        %p472 = pneg %p203
      $region42: #{_jit_forward.1} parent=19 // pred_check_branch
        %474 = sbr.rel (%p472) target = $region44
      $region43: #{_jit_forward.1} parent=19 // pred_region
        %p475 = scmp.lt.s32.totalorder %s28, 1
        %s476 = scalar_select %p475, %s28, 1
        %s477 = smul.addr %s476, 4
        %s478 = smul.addr %s477, 4
        %s479 = scalar_lea.vmem %s6, %s478
      $region44: #{_jit_forward.1} parent=19 // pred_fallthru
        _
      // Predicated region
      $region45: #{_jit_forward.1} parent=19 // pred_check
        %p480 = pneg %p229
      $region46: #{_jit_forward.1} parent=19 // pred_check_branch
        %482 = sbr.rel (%p480) target = $region48
      $region47: #{_jit_forward.1} parent=19 // pred_region
        %p483 = scmp.lt.s32.totalorder %s28, 1
        %s484 = scalar_select %p483, %s28, 1
        %s485 = scalar_lea.vmem %s7, %s484
      $region48: #{_jit_forward.1} parent=19 // pred_fallthru
        _
      // Predicated region
      $region49: #{_jit_forward.1} parent=19 // pred_check
        %p486 = pneg %p255
      $region50: #{_jit_forward.1} parent=19 // pred_check_branch
        %488 = sbr.rel (%p486) target = $region52
      $region51: #{_jit_forward.1} parent=19 // pred_region
        %p489 = scmp.lt.s32.totalorder %s28, 1
        %s490 = scalar_select %p489, %s28, 1
        %s491 = scalar_lea.vmem %s8, %s490
      $region52: #{_jit_forward.1} parent=19 // pred_fallthru
        _
      // Predicated region
      $region53: #{_jit_forward.1} parent=19 // pred_check
        %p492 = pneg %p281
      $region54: #{_jit_forward.1} parent=19 // pred_check_branch
        %494 = sbr.rel (%p492) target = $region56
      $region55: #{_jit_forward.1} parent=19 // pred_region
        %p495 = scmp.lt.s32.totalorder %s28, 1
        %s496 = scalar_select %p495, %s28, 1
        %s497 = scalar_lea.vmem %s9, %s496
      $region56: #{_jit_forward.1} parent=19 // pred_fallthru
        _
      // Predicated region
      $region57: #{_jit_forward.1} parent=19 // pred_check
        %p498 = pneg %p307
      $region58: #{_jit_forward.1} parent=19 // pred_check_branch
        %500 = sbr.rel (%p498) target = $region60
      $region59: #{_jit_forward.1} parent=19 // pred_region
        %p501 = scmp.lt.s32.totalorder %s28, 1
        %s502 = scalar_select %p501, %s28, 1
        %s503 = smul.addr %s502, 4
        %s504 = smul.addr %s503, 4
        %s505 = scalar_lea.vmem %s10, %s504
      $region60: #{_jit_forward.1} parent=19 // pred_fallthru
        _
      // Predicated region
      $region61: #{_jit_forward.1} parent=19 // pred_check
        %p506 = pneg %p333
      $region62: #{_jit_forward.1} parent=19 // pred_check_branch
        %508 = sbr.rel (%p506) target = $region64
      $region63: #{_jit_forward.1} parent=19 // pred_region
        %p509 = scmp.lt.s32.totalorder %s28, 1
        %s510 = scalar_select %p509, %s28, 1
        %s511 = scalar_lea.vmem %s11, %s510
      $region64: #{_jit_forward.1} parent=19 // pred_fallthru
        _
      // Predicated region
      $region65: #{_jit_forward.1} parent=19 // pred_check
        %p512 = pneg %p359
      $region66: #{_jit_forward.1} parent=19 // pred_check_branch
        %514 = sbr.rel (%p512) target = $region68
      $region67: #{_jit_forward.1} parent=19 // pred_region
        %p515 = scmp.lt.s32.totalorder %s28, 1
        %s516 = scalar_select %p515, %s28, 1
        %s517 = smul.addr %s516, 16
        %s518 = smul.addr %s517, 4
        %s519 = scalar_lea.vmem %s12, %s518
      $region68: #{_jit_forward.1} parent=19 // pred_fallthru
        _
      // Predicated region
      $region69: #{_jit_forward.1} parent=19 // pred_check
        %p520 = pneg %p385
      $region70: #{_jit_forward.1} parent=19 // pred_check_branch
        %522 = sbr.rel (%p520) target = $region72
      $region71: #{_jit_forward.1} parent=19 // pred_region
        %p523 = scmp.lt.s32.totalorder %s28, 1
        %s524 = scalar_select %p523, %s28, 1
        %s525 = scalar_lea.vmem %s13, %s524
      $region72: #{_jit_forward.1} parent=19 // pred_fallthru
        _
    $region20: #{_jit_forward.1} parent=5 // pred_fallthru
      _
    %p526 = scmp.le.s32.totalorder 1, %s20
    %p527 = scmp.lt.s32.totalorder %s20, 5
    %p528 = pnand %p526, %p527
    %p529 = pneg %p528
    // Predicated region
    $region73: #{_jit_forward.1} parent=5 // pred_check
      _
    $region74: #{_jit_forward.1} parent=5 // pred_check_branch
      %531 = sbr.rel (%p528) target = $region76
    $region75: #{_jit_forward.1} parent=5 // pred_region
      %s532 = ssub.s32 %s20, 1
      %p533 = scmp.lt.s32.totalorder %s29, 1
      %s534 = scalar_select %p533, %s29, 1
      %s535 = smul.addr %s534, 8
      %s536 = scalar_lea.vmem %s0, %s535
      %p537 = pneg %p58
      %p538 = pneg %p55
      %p539 = pneg %p79
      %p540 = pneg %p76
      %p541 = scmp.lt.s32.totalorder %s30, 1
      %s542 = scalar_select %p541, %s30, 1
      %s543 = scalar_lea.vmem %s2, %s542
      %p544 = pneg %p105
      %p545 = pneg %p102
      %p546 = scmp.lt.s32.totalorder %s30, 1
      %s547 = scalar_select %p546, %s30, 1
      %s548 = scalar_lea.vmem %s3, %s547
      %p549 = pneg %p131
      %p550 = pneg %p128
      %p551 = scmp.lt.s32.totalorder %s30, 1
      %s552 = scalar_select %p551, %s30, 1
      %s553 = smul.addr %s552, 4
      %s554 = smul.addr %s553, 4
      %s555 = scalar_lea.vmem %s4, %s554
      %p556 = pneg %p157
      %p557 = pneg %p154
      %p558 = scmp.lt.s32.totalorder %s30, 1
      %s559 = scalar_select %p558, %s30, 1
      %s560 = scalar_lea.vmem %s5, %s559
      %p561 = pneg %p183
      %p562 = pneg %p180
      %p563 = scmp.lt.s32.totalorder %s30, 1
      %s564 = scalar_select %p563, %s30, 1
      %s565 = smul.addr %s564, 4
      %s566 = smul.addr %s565, 4
      %s567 = scalar_lea.vmem %s6, %s566
      %p568 = pneg %p209
      %p569 = pneg %p206
      %p570 = scmp.lt.s32.totalorder %s30, 1
      %s571 = scalar_select %p570, %s30, 1
      %s572 = scalar_lea.vmem %s7, %s571
      %p573 = pneg %p235
      %p574 = pneg %p232
      %p575 = scmp.lt.s32.totalorder %s30, 1
      %s576 = scalar_select %p575, %s30, 1
      %s577 = scalar_lea.vmem %s8, %s576
      %p578 = pneg %p261
      %p579 = pneg %p258
      %p580 = scmp.lt.s32.totalorder %s30, 1
      %s581 = scalar_select %p580, %s30, 1
      %s582 = scalar_lea.vmem %s9, %s581
      %p583 = pneg %p287
      %p584 = pneg %p284
      %p585 = scmp.lt.s32.totalorder %s30, 1
      %s586 = scalar_select %p585, %s30, 1
      %s587 = smul.addr %s586, 4
      %s588 = smul.addr %s587, 4
      %s589 = scalar_lea.vmem %s10, %s588
      %p590 = pneg %p313
      %p591 = pneg %p310
      %p592 = scmp.lt.s32.totalorder %s30, 1
      %s593 = scalar_select %p592, %s30, 1
      %s594 = scalar_lea.vmem %s11, %s593
      %p595 = pneg %p339
      %p596 = pneg %p336
      %p597 = scmp.lt.s32.totalorder %s30, 1
      %s598 = scalar_select %p597, %s30, 1
      %s599 = smul.addr %s598, 16
      %s600 = smul.addr %s599, 4
      %s601 = scalar_lea.vmem %s12, %s600
      %p602 = pneg %p365
      %p603 = pneg %p362
      %p604 = scmp.lt.s32.totalorder %s30, 1
      %s605 = scalar_select %p604, %s30, 1
      %s606 = scalar_lea.vmem %s13, %s605
      %p607 = pneg %p391
      %p608 = pneg %p388
      %p609 = pneg %p417
      %p610 = pneg %p414
      %p611 = scmp.lt.s32.totalorder %s29, 1
      %s612 = scalar_select %p611, %s29, 1
      %s613 = smul.addr %s612, 8
      %s614 = scalar_lea.vmem %s14, %s613
      %p615 = scmp.lt.s32.totalorder %s29, 1
      %s616 = scalar_select %p615, %s29, 1
      %s617 = smul.addr %s616, 8
      %s618 = scalar_lea.vmem %s0, %s617
      %p619 = scmp.lt.s32.totalorder %s30, 1
      %s620 = scalar_select %p619, %s30, 1
      %s621 = scalar_lea.vmem %s2, %s620
      %p622 = scmp.lt.s32.totalorder %s30, 1
      %s623 = scalar_select %p622, %s30, 1
      %s624 = scalar_lea.vmem %s3, %s623
      %p625 = scmp.lt.s32.totalorder %s30, 1
      %s626 = scalar_select %p625, %s30, 1
      %s627 = smul.addr %s626, 4
      %s628 = smul.addr %s627, 4
      %s629 = scalar_lea.vmem %s4, %s628
      %p630 = scmp.lt.s32.totalorder %s30, 1
      %s631 = scalar_select %p630, %s30, 1
      %s632 = scalar_lea.vmem %s5, %s631
      %p633 = scmp.lt.s32.totalorder %s30, 1
      %s634 = scalar_select %p633, %s30, 1
      %s635 = smul.addr %s634, 4
      %s636 = smul.addr %s635, 4
      %s637 = scalar_lea.vmem %s6, %s636
      %p638 = scmp.lt.s32.totalorder %s30, 1
      %s639 = scalar_select %p638, %s30, 1
      %s640 = scalar_lea.vmem %s7, %s639
      %p641 = scmp.lt.s32.totalorder %s30, 1
      %s642 = scalar_select %p641, %s30, 1
      %s643 = scalar_lea.vmem %s8, %s642
      %p644 = scmp.lt.s32.totalorder %s30, 1
      %s645 = scalar_select %p644, %s30, 1
      %s646 = scalar_lea.vmem %s9, %s645
      %p647 = scmp.lt.s32.totalorder %s30, 1
      %s648 = scalar_select %p647, %s30, 1
      %s649 = smul.addr %s648, 4
      %s650 = smul.addr %s649, 4
      %s651 = scalar_lea.vmem %s10, %s650
      %p652 = scmp.lt.s32.totalorder %s30, 1
      %s653 = scalar_select %p652, %s30, 1
      %s654 = scalar_lea.vmem %s11, %s653
      %p655 = scmp.lt.s32.totalorder %s30, 1
      %s656 = scalar_select %p655, %s30, 1
      %s657 = smul.addr %s656, 16
      %s658 = smul.addr %s657, 4
      %s659 = scalar_lea.vmem %s12, %s658
      %p660 = scmp.lt.s32.totalorder %s30, 1
      %s661 = scalar_select %p660, %s30, 1
      %s662 = scalar_lea.vmem %s13, %s661
      %p663 = scmp.lt.s32.totalorder %s29, 1
      %s664 = scalar_select %p663, %s29, 1
      %s665 = smul.addr %s664, 8
      %s666 = scalar_lea.vmem %s14, %s665
      %p668 = scmp.eq.s32.totalorder %s30, 0
      // Predicated region
      $region77: #{_jit_forward.1} parent=75 // pred_check
        %p669 = pneg %p668
      $region78: #{_jit_forward.1} parent=75 // pred_check_branch
        %671 = sbr.rel (%p669) target = $region80
      $region79: #{_jit_forward.1} parent=75 // pred_region
        %v672 = vld [vmem:[%s618] sm:$0xff]
        %vm673 = vcmask 261120
        %674 = vst.msk [vmem:[%s666] sm:$0xff] %vm673, %v672
      $region80: #{_jit_forward.1} parent=75 // pred_fallthru
        _
      %v675 = vld [vmem:[%s666] sm:$0xff]
      %v676 = vld [vmem:[%s621] sm:$0x1]
      %v677 = vld [vmem:[%s624] sm:$0x1]
      %vm678 = vcmask 261120
      %v679 = vsel %vm678, %v675, 0.0
      %680 = vadd.xlane.f32.xlu0 %v679
      %v681 = vpop.xlane.xlu0 %680
      %v682 = vrcp.pop 32.0
      %v683 = vmul.f32 %v681, %v682
      %v684 = vsub.f32 %v675, %v683
      %v685 = vmul.f32 %v684, %v684
      %v686 = vsel %vm678, %v685, 0.0
      %687 = vadd.xlane.f32.xlu0 %v686
      %v688 = vpop.xlane.xlu0 %687
      %v689 = vmul.f32 %v688, %v682
      %v690 = vadd.f32 %v689, 1e-05
      %v691 = vrsqrt.pop %v690
      %v692 = vmul.f32 %v684, %v691
      %v694 = vlaneseq
      %v695 = vshrl.u32 %v694, 7
      %v696 = vsub.s32 0, %v695
      %v697 = vrot.slane %v676, %v696
      %v699 = vmul.f32 %v692, %v697
      %v701 = vlaneseq
      %v702 = vshrl.u32 %v701, 7
      %v703 = vsub.s32 0, %v702
      %v704 = vrot.slane %v677, %v703
      %v706 = vadd.f32 %v699, %v704
      %v707 = vpack.c.bf16 %v706, %v706
      %v708 = vld [vmem:[%s629] sm:$0xf]
      %v709 = vld [vmem:[%s629 + $0x4] sm:$0xf]
      %v710 = vld [vmem:[%s629 + $0x8] sm:$0xf]
      %v711 = vld [vmem:[%s629 + $0xc] sm:$0xf]
      %v712 = vld [vmem:[%s632] sm:$0x1]
      %v714 = vlaneseq
      %v715 = vshrl.u32 %v714, 7
      %v716 = vsub.s32 0, %v715
      %v717 = vrot.slane %v712, %v716
      %v723 = vunpack.c.l.b16 %v708
      %v724 = vunpack.c.l.b16 %v709
      %v725 = vunpack.c.l.b16 %v710
      %v726 = vunpack.c.l.b16 %v711
      %v727 = vpack.c.b16 %v724, %v723
      %v728 = vpack.c.b16 %v726, %v725
      %v732 = vsel %vm678, %v707, 0
      %734 = vmatprep.subr.bf16.mxu0 0
      %735 = vmatpush1.bf16.msra.mxu0 %v727
      %736 = vmatprep.subr.bf16.mxu0 0
      %737 = vmatpush1.bf16.msra.mxu0 %v728
      %738 = vmatprep.subr.bf16.mxu0 0
      %739 = vmatpush1.bf16.msra.mxu0 0
      %740 = vmatprep.subr.bf16.mxu0 0
      %741 = vmatpush1.bf16.msra.mxu0 0
      %742 = vmatprep.subr.bf16.mxu0 0
      %743 = vmatpush1.bf16.msra.mxu0 0
      %744 = vmatprep.subr.bf16.mxu0 0
      %745 = vmatpush1.bf16.msra.mxu0 0
      %746 = vmatprep.subr.bf16.mxu0 0
      %747 = vmatpush1.bf16.msra.mxu0 0
      %748 = vmatprep.subr.bf16.mxu0 0
      %749 = vmatpush1.bf16.msra.mxu0 0
      %750 = vmatprep.subr.bf16.mxu0 0
      %751 = vmatpush1.bf16.msra.mxu0 0
      %752 = vmatprep.subr.bf16.mxu0 0
      %753 = vmatpush1.bf16.msra.mxu0 0
      %754 = vmatprep.subr.bf16.mxu0 0
      %755 = vmatpush1.bf16.msra.mxu0 0
      %756 = vmatprep.subr.bf16.mxu0 0
      %757 = vmatpush1.bf16.msra.mxu0 0
      %758 = vmatprep.subr.bf16.mxu0 0
      %759 = vmatpush1.bf16.msra.mxu0 0
      %760 = vmatprep.subr.bf16.mxu0 0
      %761 = vmatpush1.bf16.msra.mxu0 0
      %762 = vmatprep.subr.bf16.mxu0 0
      %763 = vmatpush1.bf16.msra.mxu0 0
      %764 = vmatprep.subr.bf16.mxu0 0
      %765 = vmatpush1.bf16.msra.mxu0 0
      %766 = vmatprep.mubr.bf16.mxu0 0
      %767 = vmatmul.mubr.bf16.gmra.mrb[0].mxu0 %v732
      %v768 = vpop.f32.mrb[0].mxu0
      %v769 = vadd.f32 %v717, %v768
      %v770 = vpop.f32.mrb[0].mxu0
      %v771 = vpop.f32.mrb[0].mxu0
      %v772 = vpop.f32.mrb[0].mxu0
      %773 = vdwg.mxu0
      %v774 = vld [vmem:[%s1] sm:$0xff]
      %v775 = vld [vmem:[%s637] sm:$0xf]
      %v776 = vld [vmem:[%s637 + $0x4] sm:$0xf]
      %v777 = vld [vmem:[%s637 + $0x8] sm:$0xf]
      %v778 = vld [vmem:[%s637 + $0xc] sm:$0xf]
      %v779 = vmul.f32 %v769, 0.35355338
      %v780 = vpack.c.bf16 %v779, %v779
      %v781 = vpack.c.bf16 %v769, %v769
      %783 = vrot.lane.b32.xlu0 %v781, 96
      %v784 = vpop.permute.xlu0 %783
      %vm785 = vcmask 64512
      %v787 = vsel %vm785, %v780, 0
      %v790 = vsel %vm785, %v784, 0
      %792 = vmatprep.subr.bf16.mxu0 0
      %793 = vmatpush1.bf16.xpose.msra.mxu0 %v790
      %794 = vmatprep.subr.bf16.mxu0 0
      %795 = vmatpush1.bf16.xpose.msra.mxu0 0
      %796 = vmatprep.subr.bf16.mxu0 0
      %797 = vmatpush1.bf16.xpose.msra.mxu0 0
      %798 = vmatprep.subr.bf16.mxu0 0
      %799 = vmatpush1.bf16.xpose.msra.mxu0 0
      %800 = vmatprep.subr.bf16.mxu0 0
      %801 = vmatpush1.bf16.xpose.msra.mxu0 0
      %802 = vmatprep.subr.bf16.mxu0 0
      %803 = vmatpush1.bf16.xpose.msra.mxu0 0
      %804 = vmatprep.subr.bf16.mxu0 0
      %805 = vmatpush1.bf16.xpose.msra.mxu0 0
      %806 = vmatprep.subr.bf16.mxu0 0
      %807 = vmatpush1.bf16.xpose.msra.mxu0 0
      %808 = vmatprep.subr.bf16.mxu0 0
      %809 = vmatpush1.bf16.xpose.msra.mxu0 0
      %810 = vmatprep.subr.bf16.mxu0 0
      %811 = vmatpush1.bf16.xpose.msra.mxu0 0
      %812 = vmatprep.subr.bf16.mxu0 0
      %813 = vmatpush1.bf16.xpose.msra.mxu0 0
      %814 = vmatprep.subr.bf16.mxu0 0
      %815 = vmatpush1.bf16.xpose.msra.mxu0 0
      %816 = vmatprep.subr.bf16.mxu0 0
      %817 = vmatpush1.bf16.xpose.msra.mxu0 0
      %818 = vmatprep.subr.bf16.mxu0 0
      %819 = vmatpush1.bf16.xpose.msra.mxu0 0
      %820 = vmatprep.subr.bf16.mxu0 0
      %821 = vmatpush1.bf16.xpose.msra.mxu0 0
      %822 = vmatprep.subr.bf16.mxu0 0
      %823 = vmatpush1.bf16.xpose.msra.mxu0 0
      %824 = vmatprep.mubr.bf16.mxu0 0
      %825 = vmatmul.mubr.bf16.gmra.mrb[0].mxu0 %v787
      %v826 = vpop.f32.mrb[0].mxu0
      %v827 = vadd.f32 %v774, %v826
      %v828 = vpop.f32.mrb[0].mxu0
      %v829 = vpop.f32.mrb[0].mxu0
      %v830 = vpop.f32.mrb[0].mxu0
      %831 = vdwg.mxu0
      %v832 = vsel %vm785, %v827, -inf
      %833 = vmax.xlane.f32.xlu0 %v832
      %v834 = vpop.xlane.xlu0 %833
      %v835 = vsub.f32 %v827, %v834
      %v836 = vmul.f32 %v835, 1.442695
      %v837 = vpow.pop %v836
      %v838 = vsel %vm785, %v837, 0.0
      %839 = vadd.xlane.f32.xlu0 %v838
      %v840 = vpop.xlane.xlu0 %839
      %v841 = vrcp.pop %v840
      %v842 = vmul.f32 %v837, %v841
      %v843 = vpack.c.bf16 %v842, %v842
      %844 = vrot.lane.b32.xlu0 %v781, 64
      %v845 = vpop.permute.xlu0 %844
      %v847 = vsel %vm785, %v843, 0
      %vm849 = vcmask 1043456
      %v851 = vsel %vm849, %v845, 0
      %853 = vmatprep.subr.bf16.mxu0 0
      %854 = vmatpush1.bf16.msra.mxu0 %v851
      %855 = vmatprep.subr.bf16.mxu0 0
      %856 = vmatpush1.bf16.msra.mxu0 0
      %857 = vmatprep.subr.bf16.mxu0 0
      %858 = vmatpush1.bf16.msra.mxu0 0
      %859 = vmatprep.subr.bf16.mxu0 0
      %860 = vmatpush1.bf16.msra.mxu0 0
      %861 = vmatprep.subr.bf16.mxu0 0
      %862 = vmatpush1.bf16.msra.mxu0 0
      %863 = vmatprep.subr.bf16.mxu0 0
      %864 = vmatpush1.bf16.msra.mxu0 0
      %865 = vmatprep.subr.bf16.mxu0 0
      %866 = vmatpush1.bf16.msra.mxu0 0
      %867 = vmatprep.subr.bf16.mxu0 0
      %868 = vmatpush1.bf16.msra.mxu0 0
      %869 = vmatprep.subr.bf16.mxu0 0
      %870 = vmatpush1.bf16.msra.mxu0 0
      %871 = vmatprep.subr.bf16.mxu0 0
      %872 = vmatpush1.bf16.msra.mxu0 0
      %873 = vmatprep.subr.bf16.mxu0 0
      %874 = vmatpush1.bf16.msra.mxu0 0
      %875 = vmatprep.subr.bf16.mxu0 0
      %876 = vmatpush1.bf16.msra.mxu0 0
      %877 = vmatprep.subr.bf16.mxu0 0
      %878 = vmatpush1.bf16.msra.mxu0 0
      %879 = vmatprep.subr.bf16.mxu0 0
      %880 = vmatpush1.bf16.msra.mxu0 0
      %881 = vmatprep.subr.bf16.mxu0 0
      %882 = vmatpush1.bf16.msra.mxu0 0
      %883 = vmatprep.subr.bf16.mxu0 0
      %884 = vmatpush1.bf16.msra.mxu0 0
      %885 = vmatprep.mubr.bf16.mxu0 0
      %886 = vmatmul.mubr.bf16.gmra.mrb[0].mxu0 %v847
      %v887 = vpop.f32.mrb[0].mxu0
      %v888 = vadd.f32 0.0, %v887
      %v889 = vpop.f32.mrb[0].mxu0
      %v890 = vpop.f32.mrb[0].mxu0
      %v891 = vpop.f32.mrb[0].mxu0
      %892 = vdwg.mxu0
      %v893 = vpack.c.bf16 %v888, %v888
      %895 = vrot.lane.b32.xlu0 %v780, 120
      %v896 = vpop.permute.xlu0 %895
      %897 = vrot.lane.b32.xlu0 %v781, 88
      %v898 = vpop.permute.xlu0 %897
      %v900 = vsel %vm785, %v896, 0
      %v903 = vsel %vm785, %v898, 0
      %905 = vmatprep.subr.bf16.mxu0 0
      %906 = vmatpush1.bf16.xpose.msra.mxu0 %v903
      %907 = vmatprep.subr.bf16.mxu0 0
      %908 = vmatpush1.bf16.xpose.msra.mxu0 0
      %909 = vmatprep.subr.bf16.mxu0 0
      %910 = vmatpush1.bf16.xpose.msra.mxu0 0
      %911 = vmatprep.subr.bf16.mxu0 0
      %912 = vmatpush1.bf16.xpose.msra.mxu0 0
      %913 = vmatprep.subr.bf16.mxu0 0
      %914 = vmatpush1.bf16.xpose.msra.mxu0 0
      %915 = vmatprep.subr.bf16.mxu0 0
      %916 = vmatpush1.bf16.xpose.msra.mxu0 0
      %917 = vmatprep.subr.bf16.mxu0 0
      %918 = vmatpush1.bf16.xpose.msra.mxu0 0
      %919 = vmatprep.subr.bf16.mxu0 0
      %920 = vmatpush1.bf16.xpose.msra.mxu0 0
      %921 = vmatprep.subr.bf16.mxu0 0
      %922 = vmatpush1.bf16.xpose.msra.mxu0 0
      %923 = vmatprep.subr.bf16.mxu0 0
      %924 = vmatpush1.bf16.xpose.msra.mxu0 0
      %925 = vmatprep.subr.bf16.mxu0 0
      %926 = vmatpush1.bf16.xpose.msra.mxu0 0
      %927 = vmatprep.subr.bf16.mxu0 0
      %928 = vmatpush1.bf16.xpose.msra.mxu0 0
      %929 = vmatprep.subr.bf16.mxu0 0
      %930 = vmatpush1.bf16.xpose.msra.mxu0 0
      %931 = vmatprep.subr.bf16.mxu0 0
      %932 = vmatpush1.bf16.xpose.msra.mxu0 0
      %933 = vmatprep.subr.bf16.mxu0 0
      %934 = vmatpush1.bf16.xpose.msra.mxu0 0
      %935 = vmatprep.subr.bf16.mxu0 0
      %936 = vmatpush1.bf16.xpose.msra.mxu0 0
      %937 = vmatprep.mubr.bf16.mxu0 0
      %938 = vmatmul.mubr.bf16.gmra.mrb[0].mxu0 %v900
      %v939 = vpop.f32.mrb[0].mxu0
      %v940 = vadd.f32 %v774, %v939
      %v941 = vpop.f32.mrb[0].mxu0
      %v942 = vpop.f32.mrb[0].mxu0
      %v943 = vpop.f32.mrb[0].mxu0
      %944 = vdwg.mxu0
      %v945 = vsel %vm785, %v940, -inf
      %946 = vmax.xlane.f32.xlu0 %v945
      %v947 = vpop.xlane.xlu0 %946
      %v948 = vsub.f32 %v940, %v947
      %v949 = vmul.f32 %v948, 1.442695
      %v950 = vpow.pop %v949
      %v951 = vsel %vm785, %v950, 0.0
      %952 = vadd.xlane.f32.xlu0 %v951
      %v953 = vpop.xlane.xlu0 %952
      %v954 = vrcp.pop %v953
      %v955 = vmul.f32 %v950, %v954
      %v956 = vpack.c.bf16 %v955, %v955
      %957 = vrot.lane.b32.xlu0 %v781, 56
      %v958 = vpop.permute.xlu0 %957
      %v960 = vsel %vm785, %v956, 0
      %v963 = vsel %vm849, %v958, 0
      %965 = vmatprep.subr.bf16.mxu0 0
      %966 = vmatpush1.bf16.msra.mxu0 %v963
      %967 = vmatprep.subr.bf16.mxu0 0
      %968 = vmatpush1.bf16.msra.mxu0 0
      %969 = vmatprep.subr.bf16.mxu0 0
      %970 = vmatpush1.bf16.msra.mxu0 0
      %971 = vmatprep.subr.bf16.mxu0 0
      %972 = vmatpush1.bf16.msra.mxu0 0
      %973 = vmatprep.subr.bf16.mxu0 0
      %974 = vmatpush1.bf16.msra.mxu0 0
      %975 = vmatprep.subr.bf16.mxu0 0
      %976 = vmatpush1.bf16.msra.mxu0 0
      %977 = vmatprep.subr.bf16.mxu0 0
      %978 = vmatpush1.bf16.msra.mxu0 0
      %979 = vmatprep.subr.bf16.mxu0 0
      %980 = vmatpush1.bf16.msra.mxu0 0
      %981 = vmatprep.subr.bf16.mxu0 0
      %982 = vmatpush1.bf16.msra.mxu0 0
      %983 = vmatprep.subr.bf16.mxu0 0
      %984 = vmatpush1.bf16.msra.mxu0 0
      %985 = vmatprep.subr.bf16.mxu0 0
      %986 = vmatpush1.bf16.msra.mxu0 0
      %987 = vmatprep.subr.bf16.mxu0 0
      %988 = vmatpush1.bf16.msra.mxu0 0
      %989 = vmatprep.subr.bf16.mxu0 0
      %990 = vmatpush1.bf16.msra.mxu0 0
      %991 = vmatprep.subr.bf16.mxu0 0
      %992 = vmatpush1.bf16.msra.mxu0 0
      %993 = vmatprep.subr.bf16.mxu0 0
      %994 = vmatpush1.bf16.msra.mxu0 0
      %995 = vmatprep.subr.bf16.mxu0 0
      %996 = vmatpush1.bf16.msra.mxu0 0
      %997 = vmatprep.mubr.bf16.mxu0 0
      %998 = vmatmul.mubr.bf16.gmra.mrb[0].mxu0 %v960
      %v999 = vpop.f32.mrb[0].mxu0
      %v1000 = vadd.f32 0.0, %v999
      %v1001 = vpop.f32.mrb[0].mxu0
      %v1002 = vpop.f32.mrb[0].mxu0
      %v1003 = vpop.f32.mrb[0].mxu0
      %1004 = vdwg.mxu0
      %v1005 = vpack.c.bf16 %v1000, %v1000
      %v1007 = vsel %vm785, %v1005, 0
      %v1010 = vsel %vm849, %v776, 0
      %1012 = vmatprep.subr.bf16.mxu0 0
      %1013 = vmatpush1.bf16.msra.mxu0 %v1010
      %1014 = vmatprep.subr.bf16.mxu0 0
      %1015 = vmatpush1.bf16.msra.mxu0 0
      %1016 = vmatprep.subr.bf16.mxu0 0
      %1017 = vmatpush1.bf16.msra.mxu0 0
      %1018 = vmatprep.subr.bf16.mxu0 0
      %1019 = vmatpush1.bf16.msra.mxu0 0
      %1020 = vmatprep.subr.bf16.mxu0 0
      %1021 = vmatpush1.bf16.msra.mxu0 0
      %1022 = vmatprep.subr.bf16.mxu0 0
      %1023 = vmatpush1.bf16.msra.mxu0 0
      %1024 = vmatprep.subr.bf16.mxu0 0
      %1025 = vmatpush1.bf16.msra.mxu0 0
      %1026 = vmatprep.subr.bf16.mxu0 0
      %1027 = vmatpush1.bf16.msra.mxu0 0
      %1028 = vmatprep.subr.bf16.mxu0 0
      %1029 = vmatpush1.bf16.msra.mxu0 0
      %1030 = vmatprep.subr.bf16.mxu0 0
      %1031 = vmatpush1.bf16.msra.mxu0 0
      %1032 = vmatprep.subr.bf16.mxu0 0
      %1033 = vmatpush1.bf16.msra.mxu0 0
      %1034 = vmatprep.subr.bf16.mxu0 0
      %1035 = vmatpush1.bf16.msra.mxu0 0
      %1036 = vmatprep.subr.bf16.mxu0 0
      %1037 = vmatpush1.bf16.msra.mxu0 0
      %1038 = vmatprep.subr.bf16.mxu0 0
      %1039 = vmatpush1.bf16.msra.mxu0 0
      %1040 = vmatprep.subr.bf16.mxu0 0
      %1041 = vmatpush1.bf16.msra.mxu0 0
      %1042 = vmatprep.subr.bf16.mxu0 0
      %1043 = vmatpush1.bf16.msra.mxu0 0
      %1044 = vmatprep.mubr.bf16.mxu0 0
      %1045 = vmatmul.mubr.bf16.gmra.mrb[0].mxu0 %v1007
      %v1046 = vpop.f32.mrb[0].mxu0
      %v1047 = vadd.f32 0.0, %v1046
      %v1048 = vpop.f32.mrb[0].mxu0
      %v1049 = vpop.f32.mrb[0].mxu0
      %v1050 = vpop.f32.mrb[0].mxu0
      %1051 = vdwg.mxu0
      %v1053 = vsel %vm785, %v893, 0
      %v1056 = vsel %vm849, %v775, 0
      %1058 = vmatprep.subr.bf16.mxu0 0
      %1059 = vmatpush1.bf16.msra.mxu0 %v1056
      %1060 = vmatprep.subr.bf16.mxu0 0
      %1061 = vmatpush1.bf16.msra.mxu0 0
      %1062 = vmatprep.subr.bf16.mxu0 0
      %1063 = vmatpush1.bf16.msra.mxu0 0
      %1064 = vmatprep.subr.bf16.mxu0 0
      %1065 = vmatpush1.bf16.msra.mxu0 0
      %1066 = vmatprep.subr.bf16.mxu0 0
      %1067 = vmatpush1.bf16.msra.mxu0 0
      %1068 = vmatprep.subr.bf16.mxu0 0
      %1069 = vmatpush1.bf16.msra.mxu0 0
      %1070 = vmatprep.subr.bf16.mxu0 0
      %1071 = vmatpush1.bf16.msra.mxu0 0
      %1072 = vmatprep.subr.bf16.mxu0 0
      %1073 = vmatpush1.bf16.msra.mxu0 0
      %1074 = vmatprep.subr.bf16.mxu0 0
      %1075 = vmatpush1.bf16.msra.mxu0 0
      %1076 = vmatprep.subr.bf16.mxu0 0
      %1077 = vmatpush1.bf16.msra.mxu0 0
      %1078 = vmatprep.subr.bf16.mxu0 0
      %1079 = vmatpush1.bf16.msra.mxu0 0
      %1080 = vmatprep.subr.bf16.mxu0 0
      %1081 = vmatpush1.bf16.msra.mxu0 0
      %1082 = vmatprep.subr.bf16.mxu0 0
      %1083 = vmatpush1.bf16.msra.mxu0 0
      %1084 = vmatprep.subr.bf16.mxu0 0
      %1085 = vmatpush1.bf16.msra.mxu0 0
      %1086 = vmatprep.subr.bf16.mxu0 0
      %1087 = vmatpush1.bf16.msra.mxu0 0
      %1088 = vmatprep.subr.bf16.mxu0 0
      %1089 = vmatpush1.bf16.msra.mxu0 0
      %1090 = vmatprep.mubr.bf16.mxu0 0
      %1091 = vmatmul.mubr.bf16.gmra.mrb[0].mxu0 %v1053
      %v1092 = vpop.f32.mrb[0].mxu0
      %v1093 = vadd.f32 %v1047, %v1092
      %v1094 = vpop.f32.mrb[0].mxu0
      %v1095 = vpop.f32.mrb[0].mxu0
      %v1096 = vpop.f32.mrb[0].mxu0
      %1097 = vdwg.mxu0
      %1098 = vrot.lane.b32.xlu0 %v780, 112
      %v1099 = vpop.permute.xlu0 %1098
      %1100 = vrot.lane.b32.xlu0 %v781, 80
      %v1101 = vpop.permute.xlu0 %1100
      %v1103 = vsel %vm785, %v1099, 0
      %v1106 = vsel %vm785, %v1101, 0
      %1108 = vmatprep.subr.bf16.mxu0 0
      %1109 = vmatpush1.bf16.xpose.msra.mxu0 %v1106
      %1110 = vmatprep.subr.bf16.mxu0 0
      %1111 = vmatpush1.bf16.xpose.msra.mxu0 0
      %1112 = vmatprep.subr.bf16.mxu0 0
      %1113 = vmatpush1.bf16.xpose.msra.mxu0 0
      %1114 = vmatprep.subr.bf16.mxu0 0
      %1115 = vmatpush1.bf16.xpose.msra.mxu0 0
      %1116 = vmatprep.subr.bf16.mxu0 0
      %1117 = vmatpush1.bf16.xpose.msra.mxu0 0
      %1118 = vmatprep.subr.bf16.mxu0 0
      %1119 = vmatpush1.bf16.xpose.msra.mxu0 0
      %1120 = vmatprep.subr.bf16.mxu0 0
      %1121 = vmatpush1.bf16.xpose.msra.mxu0 0
      %1122 = vmatprep.subr.bf16.mxu0 0
      %1123 = vmatpush1.bf16.xpose.msra.mxu0 0
      %1124 = vmatprep.subr.bf16.mxu0 0
      %1125 = vmatpush1.bf16.xpose.msra.mxu0 0
      %1126 = vmatprep.subr.bf16.mxu0 0
      %1127 = vmatpush1.bf16.xpose.msra.mxu0 0
      %1128 = vmatprep.subr.bf16.mxu0 0
      %1129 = vmatpush1.bf16.xpose.msra.mxu0 0
      %1130 = vmatprep.subr.bf16.mxu0 0
      %1131 = vmatpush1.bf16.xpose.msra.mxu0 0
      %1132 = vmatprep.subr.bf16.mxu0 0
      %1133 = vmatpush1.bf16.xpose.msra.mxu0 0
      %1134 = vmatprep.subr.bf16.mxu0 0
      %1135 = vmatpush1.bf16.xpose.msra.mxu0 0
      %1136 = vmatprep.subr.bf16.mxu0 0
      %1137 = vmatpush1.bf16.xpose.msra.mxu0 0
      %1138 = vmatprep.subr.bf16.mxu0 0
      %1139 = vmatpush1.bf16.xpose.msra.mxu0 0
      %1140 = vmatprep.mubr.bf16.mxu0 0
      %1141 = vmatmul.mubr.bf16.gmra.mrb[0].mxu0 %v1103
      %v1142 = vpop.f32.mrb[0].mxu0
      %v1143 = vadd.f32 %v774, %v1142
      %v1144 = vpop.f32.mrb[0].mxu0
      %v1145 = vpop.f32.mrb[0].mxu0
      %v1146 = vpop.f32.mrb[0].mxu0
      %1147 = vdwg.mxu0
      %v1148 = vsel %vm785, %v1143, -inf
      %1149 = vmax.xlane.f32.xlu0 %v1148
      %v1150 = vpop.xlane.xlu0 %1149
      %v1151 = vsub.f32 %v1143, %v1150
      %v1152 = vmul.f32 %v1151, 1.442695
      %v1153 = vpow.pop %v1152
      %v1154 = vsel %vm785, %v1153, 0.0
      %1155 = vadd.xlane.f32.xlu0 %v1154
      %v1156 = vpop.xlane.xlu0 %1155
      %v1157 = vrcp.pop %v1156
      %v1158 = vmul.f32 %v1153, %v1157
      %v1159 = vpack.c.bf16 %v1158, %v1158
      %1160 = vrot.lane.b32.xlu0 %v781, 48
      %v1161 = vpop.permute.xlu0 %1160
      %v1163 = vsel %vm785, %v1159, 0
      %v1166 = vsel %vm849, %v1161, 0
      %1168 = vmatprep.subr.bf16.mxu0 0
      %1169 = vmatpush1.bf16.msra.mxu0 %v1166
      %1170 = vmatprep.subr.bf16.mxu0 0
      %1171 = vmatpush1.bf16.msra.mxu0 0
      %1172 = vmatprep.subr.bf16.mxu0 0
      %1173 = vmatpush1.bf16.msra.mxu0 0
      %1174 = vmatprep.subr.bf16.mxu0 0
      %1175 = vmatpush1.bf16.msra.mxu0 0
      %1176 = vmatprep.subr.bf16.mxu0 0
      %1177 = vmatpush1.bf16.msra.mxu0 0
      %1178 = vmatprep.subr.bf16.mxu0 0
      %1179 = vmatpush1.bf16.msra.mxu0 0
      %1180 = vmatprep.subr.bf16.mxu0 0
      %1181 = vmatpush1.bf16.msra.mxu0 0
      %1182 = vmatprep.subr.bf16.mxu0 0
      %1183 = vmatpush1.bf16.msra.mxu0 0
      %1184 = vmatprep.subr.bf16.mxu0 0
      %1185 = vmatpush1.bf16.msra.mxu0 0
      %1186 = vmatprep.subr.bf16.mxu0 0
      %1187 = vmatpush1.bf16.msra.mxu0 0
      %1188 = vmatprep.subr.bf16.mxu0 0
      %1189 = vmatpush1.bf16.msra.mxu0 0
      %1190 = vmatprep.subr.bf16.mxu0 0
      %1191 = vmatpush1.bf16.msra.mxu0 0
      %1192 = vmatprep.subr.bf16.mxu0 0
      %1193 = vmatpush1.bf16.msra.mxu0 0
      %1194 = vmatprep.subr.bf16.mxu0 0
      %1195 = vmatpush1.bf16.msra.mxu0 0
      %1196 = vmatprep.subr.bf16.mxu0 0
      %1197 = vmatpush1.bf16.msra.mxu0 0
      %1198 = vmatprep.subr.bf16.mxu0 0
      %1199 = vmatpush1.bf16.msra.mxu0 0
      %1200 = vmatprep.mubr.bf16.mxu0 0
      %1201 = vmatmul.mubr.bf16.gmra.mrb[0].mxu0 %v1163
      %v1202 = vpop.f32.mrb[0].mxu0
      %v1203 = vadd.f32 0.0, %v1202
      %v1204 = vpop.f32.mrb[0].mxu0
      %v1205 = vpop.f32.mrb[0].mxu0
      %v1206 = vpop.f32.mrb[0].mxu0
      %1207 = vdwg.mxu0
      %v1208 = vpack.c.bf16 %v1203, %v1203
      %v1210 = vsel %vm785, %v1208, 0
      %v1213 = vsel %vm849, %v777, 0
      %1215 = vmatprep.subr.bf16.mxu0 0
      %1216 = vmatpush1.bf16.msra.mxu0 %v1213
      %1217 = vmatprep.subr.bf16.mxu0 0
      %1218 = vmatpush1.bf16.msra.mxu0 0
      %1219 = vmatprep.subr.bf16.mxu0 0
      %1220 = vmatpush1.bf16.msra.mxu0 0
      %1221 = vmatprep.subr.bf16.mxu0 0
      %1222 = vmatpush1.bf16.msra.mxu0 0
      %1223 = vmatprep.subr.bf16.mxu0 0
      %1224 = vmatpush1.bf16.msra.mxu0 0
      %1225 = vmatprep.subr.bf16.mxu0 0
      %1226 = vmatpush1.bf16.msra.mxu0 0
      %1227 = vmatprep.subr.bf16.mxu0 0
      %1228 = vmatpush1.bf16.msra.mxu0 0
      %1229 = vmatprep.subr.bf16.mxu0 0
      %1230 = vmatpush1.bf16.msra.mxu0 0
      %1231 = vmatprep.subr.bf16.mxu0 0
      %1232 = vmatpush1.bf16.msra.mxu0 0
      %1233 = vmatprep.subr.bf16.mxu0 0
      %1234 = vmatpush1.bf16.msra.mxu0 0
      %1235 = vmatprep.subr.bf16.mxu0 0
      %1236 = vmatpush1.bf16.msra.mxu0 0
      %1237 = vmatprep.subr.bf16.mxu0 0
      %1238 = vmatpush1.bf16.msra.mxu0 0
      %1239 = vmatprep.subr.bf16.mxu0 0
      %1240 = vmatpush1.bf16.msra.mxu0 0
      %1241 = vmatprep.subr.bf16.mxu0 0
      %1242 = vmatpush1.bf16.msra.mxu0 0
      %1243 = vmatprep.subr.bf16.mxu0 0
      %1244 = vmatpush1.bf16.msra.mxu0 0
      %1245 = vmatprep.subr.bf16.mxu0 0
      %1246 = vmatpush1.bf16.msra.mxu0 0
      %1247 = vmatprep.mubr.bf16.mxu0 0
      %1248 = vmatmul.mubr.bf16.gmra.mrb[0].mxu0 %v1210
      %v1249 = vpop.f32.mrb[0].mxu0
      %v1250 = vadd.f32 0.0, %v1249
      %v1251 = vpop.f32.mrb[0].mxu0
      %v1252 = vpop.f32.mrb[0].mxu0
      %v1253 = vpop.f32.mrb[0].mxu0
      %1254 = vdwg.mxu0
      %v1255 = vadd.f32 %v1093, %v1250
      %1256 = vrot.lane.b32.xlu0 %v780, 104
      %v1257 = vpop.permute.xlu0 %1256
      %1258 = vrot.lane.b32.xlu0 %v781, 72
      %v1259 = vpop.permute.xlu0 %1258
      %v1261 = vsel %vm785, %v1257, 0
      %v1264 = vsel %vm785, %v1259, 0
      %1266 = vmatprep.subr.bf16.mxu0 0
      %1267 = vmatpush1.bf16.xpose.msra.mxu0 %v1264
      %1268 = vmatprep.subr.bf16.mxu0 0
      %1269 = vmatpush1.bf16.xpose.msra.mxu0 0
      %1270 = vmatprep.subr.bf16.mxu0 0
      %1271 = vmatpush1.bf16.xpose.msra.mxu0 0
      %1272 = vmatprep.subr.bf16.mxu0 0
      %1273 = vmatpush1.bf16.xpose.msra.mxu0 0
      %1274 = vmatprep.subr.bf16.mxu0 0
      %1275 = vmatpush1.bf16.xpose.msra.mxu0 0
      %1276 = vmatprep.subr.bf16.mxu0 0
      %1277 = vmatpush1.bf16.xpose.msra.mxu0 0
      %1278 = vmatprep.subr.bf16.mxu0 0
      %1279 = vmatpush1.bf16.xpose.msra.mxu0 0
      %1280 = vmatprep.subr.bf16.mxu0 0
      %1281 = vmatpush1.bf16.xpose.msra.mxu0 0
      %1282 = vmatprep.subr.bf16.mxu0 0
      %1283 = vmatpush1.bf16.xpose.msra.mxu0 0
      %1284 = vmatprep.subr.bf16.mxu0 0
      %1285 = vmatpush1.bf16.xpose.msra.mxu0 0
      %1286 = vmatprep.subr.bf16.mxu0 0
      %1287 = vmatpush1.bf16.xpose.msra.mxu0 0
      %1288 = vmatprep.subr.bf16.mxu0 0
      %1289 = vmatpush1.bf16.xpose.msra.mxu0 0
      %1290 = vmatprep.subr.bf16.mxu0 0
      %1291 = vmatpush1.bf16.xpose.msra.mxu0 0
      %1292 = vmatprep.subr.bf16.mxu0 0
      %1293 = vmatpush1.bf16.xpose.msra.mxu0 0
      %1294 = vmatprep.subr.bf16.mxu0 0
      %1295 = vmatpush1.bf16.xpose.msra.mxu0 0
      %1296 = vmatprep.subr.bf16.mxu0 0
      %1297 = vmatpush1.bf16.xpose.msra.mxu0 0
      %1298 = vmatprep.mubr.bf16.mxu0 0
      %1299 = vmatmul.mubr.bf16.gmra.mrb[0].mxu0 %v1261
      %v1300 = vpop.f32.mrb[0].mxu0
      %v1301 = vadd.f32 %v774, %v1300
      %v1302 = vpop.f32.mrb[0].mxu0
      %v1303 = vpop.f32.mrb[0].mxu0
      %v1304 = vpop.f32.mrb[0].mxu0
      %1305 = vdwg.mxu0
      %v1306 = vsel %vm785, %v1301, -inf
      %1307 = vmax.xlane.f32.xlu0 %v1306
      %v1308 = vpop.xlane.xlu0 %1307
      %v1309 = vsub.f32 %v1301, %v1308
      %v1310 = vmul.f32 %v1309, 1.442695
      %v1311 = vpow.pop %v1310
      %v1312 = vsel %vm785, %v1311, 0.0
      %1313 = vadd.xlane.f32.xlu0 %v1312
      %v1314 = vpop.xlane.xlu0 %1313
      %v1315 = vrcp.pop %v1314
      %v1316 = vmul.f32 %v1311, %v1315
      %v1317 = vpack.c.bf16 %v1316, %v1316
      %1318 = vrot.lane.b32.xlu0 %v781, 40
      %v1319 = vpop.permute.xlu0 %1318
      %v1321 = vsel %vm785, %v1317, 0
      %v1324 = vsel %vm849, %v1319, 0
      %1326 = vmatprep.subr.bf16.mxu0 0
      %1327 = vmatpush1.bf16.msra.mxu0 %v1324
      %1328 = vmatprep.subr.bf16.mxu0 0
      %1329 = vmatpush1.bf16.msra.mxu0 0
      %1330 = vmatprep.subr.bf16.mxu0 0
      %1331 = vmatpush1.bf16.msra.mxu0 0
      %1332 = vmatprep.subr.bf16.mxu0 0
      %1333 = vmatpush1.bf16.msra.mxu0 0
      %1334 = vmatprep.subr.bf16.mxu0 0
      %1335 = vmatpush1.bf16.msra.mxu0 0
      %1336 = vmatprep.subr.bf16.mxu0 0
      %1337 = vmatpush1.bf16.msra.mxu0 0
      %1338 = vmatprep.subr.bf16.mxu0 0
      %1339 = vmatpush1.bf16.msra.mxu0 0
      %1340 = vmatprep.subr.bf16.mxu0 0
      %1341 = vmatpush1.bf16.msra.mxu0 0
      %1342 = vmatprep.subr.bf16.mxu0 0
      %1343 = vmatpush1.bf16.msra.mxu0 0
      %1344 = vmatprep.subr.bf16.mxu0 0
      %1345 = vmatpush1.bf16.msra.mxu0 0
      %1346 = vmatprep.subr.bf16.mxu0 0
      %1347 = vmatpush1.bf16.msra.mxu0 0
      %1348 = vmatprep.subr.bf16.mxu0 0
      %1349 = vmatpush1.bf16.msra.mxu0 0
      %1350 = vmatprep.subr.bf16.mxu0 0
      %1351 = vmatpush1.bf16.msra.mxu0 0
      %1352 = vmatprep.subr.bf16.mxu0 0
      %1353 = vmatpush1.bf16.msra.mxu0 0
      %1354 = vmatprep.subr.bf16.mxu0 0
      %1355 = vmatpush1.bf16.msra.mxu0 0
      %1356 = vmatprep.subr.bf16.mxu0 0
      %1357 = vmatpush1.bf16.msra.mxu0 0
      %1358 = vmatprep.mubr.bf16.mxu0 0
      %1359 = vmatmul.mubr.bf16.gmra.mrb[0].mxu0 %v1321
      %v1360 = vpop.f32.mrb[0].mxu0
      %v1361 = vadd.f32 0.0, %v1360
      %v1362 = vpop.f32.mrb[0].mxu0
      %v1363 = vpop.f32.mrb[0].mxu0
      %v1364 = vpop.f32.mrb[0].mxu0
      %1365 = vdwg.mxu0
      %v1366 = vpack.c.bf16 %v1361, %v1361
      %v1368 = vsel %vm785, %v1366, 0
      %v1371 = vsel %vm849, %v778, 0
      %1373 = vmatprep.subr.bf16.mxu0 0
      %1374 = vmatpush1.bf16.msra.mxu0 %v1371
      %1375 = vmatprep.subr.bf16.mxu0 0
      %1376 = vmatpush1.bf16.msra.mxu0 0
      %1377 = vmatprep.subr.bf16.mxu0 0
      %1378 = vmatpush1.bf16.msra.mxu0 0
      %1379 = vmatprep.subr.bf16.mxu0 0
      %1380 = vmatpush1.bf16.msra.mxu0 0
      %1381 = vmatprep.subr.bf16.mxu0 0
      %1382 = vmatpush1.bf16.msra.mxu0 0
      %1383 = vmatprep.subr.bf16.mxu0 0
      %1384 = vmatpush1.bf16.msra.mxu0 0
      %1385 = vmatprep.subr.bf16.mxu0 0
      %1386 = vmatpush1.bf16.msra.mxu0 0
      %1387 = vmatprep.subr.bf16.mxu0 0
      %1388 = vmatpush1.bf16.msra.mxu0 0
      %1389 = vmatprep.subr.bf16.mxu0 0
      %1390 = vmatpush1.bf16.msra.mxu0 0
      %1391 = vmatprep.subr.bf16.mxu0 0
      %1392 = vmatpush1.bf16.msra.mxu0 0
      %1393 = vmatprep.subr.bf16.mxu0 0
      %1394 = vmatpush1.bf16.msra.mxu0 0
      %1395 = vmatprep.subr.bf16.mxu0 0
      %1396 = vmatpush1.bf16.msra.mxu0 0
      %1397 = vmatprep.subr.bf16.mxu0 0
      %1398 = vmatpush1.bf16.msra.mxu0 0
      %1399 = vmatprep.subr.bf16.mxu0 0
      %1400 = vmatpush1.bf16.msra.mxu0 0
      %1401 = vmatprep.subr.bf16.mxu0 0
      %1402 = vmatpush1.bf16.msra.mxu0 0
      %1403 = vmatprep.subr.bf16.mxu0 0
      %1404 = vmatpush1.bf16.msra.mxu0 0
      %1405 = vmatprep.mubr.bf16.mxu0 0
      %1406 = vmatmul.mubr.bf16.gmra.mrb[0].mxu0 %v1368
      %v1407 = vpop.f32.mrb[0].mxu0
      %v1408 = vadd.f32 0.0, %v1407
      %v1409 = vpop.f32.mrb[0].mxu0
      %v1410 = vpop.f32.mrb[0].mxu0
      %v1411 = vpop.f32.mrb[0].mxu0
      %1412 = vdwg.mxu0
      %v1413 = vadd.f32 %v1255, %v1408
      %v1414 = vadd.f32 %v675, %v1413
      %v1415 = vld [vmem:[%s640] sm:$0x1]
      %v1417 = vlaneseq
      %v1418 = vshrl.u32 %v1417, 7
      %v1419 = vsub.s32 0, %v1418
      %v1420 = vrot.slane %v1415, %v1419
      %v1422 = vadd.f32 %v1414, %v1420
      %v1423 = vld [vmem:[%s643] sm:$0x1]
      %v1424 = vld [vmem:[%s646] sm:$0x1]
      %v1425 = vsel %vm678, %v1422, 0.0
      %1426 = vadd.xlane.f32.xlu0 %v1425
      %v1427 = vpop.xlane.xlu0 %1426
      %v1428 = vmul.f32 %v1427, %v682
      %v1429 = vsub.f32 %v1422, %v1428
      %v1430 = vmul.f32 %v1429, %v1429
      %v1431 = vsel %vm678, %v1430, 0.0
      %1432 = vadd.xlane.f32.xlu0 %v1431
      %v1433 = vpop.xlane.xlu0 %1432
      %v1434 = vmul.f32 %v1433, %v682
      %v1435 = vadd.f32 %v1434, 1e-05
      %v1436 = vrsqrt.pop %v1435
      %v1437 = vmul.f32 %v1429, %v1436
      %v1439 = vlaneseq
      %v1440 = vshrl.u32 %v1439, 7
      %v1441 = vsub.s32 0, %v1440
      %v1442 = vrot.slane %v1423, %v1441
      %v1444 = vmul.f32 %v1437, %v1442
      %v1446 = vlaneseq
      %v1447 = vshrl.u32 %v1446, 7
      %v1448 = vsub.s32 0, %v1447
      %v1449 = vrot.slane %v1424, %v1448
      %v1451 = vadd.f32 %v1444, %v1449
      %v1452 = vpack.c.bf16 %v1451, %v1451
      %v1453 = vld [vmem:[%s651] sm:$0xf]
      %v1454 = vld [vmem:[%s651 + $0x4] sm:$0xf]
      %v1455 = vld [vmem:[%s651 + $0x8] sm:$0xf]
      %v1456 = vld [vmem:[%s651 + $0xc] sm:$0xf]
      %v1457 = vld [vmem:[%s654] sm:$0x1]
      %v1459 = vlaneseq
      %v1460 = vshrl.u32 %v1459, 7
      %v1461 = vsub.s32 0, %v1460
      %v1462 = vrot.slane %v1457, %v1461
      %v1468 = vunpack.c.l.b16 %v1453
      %v1469 = vunpack.c.l.b16 %v1454
      %v1470 = vunpack.c.l.b16 %v1455
      %v1471 = vunpack.c.l.b16 %v1456
      %v1472 = vpack.c.b16 %v1469, %v1468
      %v1473 = vpack.c.b16 %v1471, %v1470
      %v1477 = vsel %vm678, %v1452, 0
      %1479 = vmatprep.subr.bf16.mxu0 0
      %1480 = vmatpush1.bf16.msra.mxu0 %v1472
      %1481 = vmatprep.subr.bf16.mxu0 0
      %1482 = vmatpush1.bf16.msra.mxu0 %v1473
      %1483 = vmatprep.subr.bf16.mxu0 0
      %1484 = vmatpush1.bf16.msra.mxu0 0
      %1485 = vmatprep.subr.bf16.mxu0 0
      %1486 = vmatpush1.bf16.msra.mxu0 0
      %1487 = vmatprep.subr.bf16.mxu0 0
      %1488 = vmatpush1.bf16.msra.mxu0 0
      %1489 = vmatprep.subr.bf16.mxu0 0
      %1490 = vmatpush1.bf16.msra.mxu0 0
      %1491 = vmatprep.subr.bf16.mxu0 0
      %1492 = vmatpush1.bf16.msra.mxu0 0
      %1493 = vmatprep.subr.bf16.mxu0 0
      %1494 = vmatpush1.bf16.msra.mxu0 0
      %1495 = vmatprep.subr.bf16.mxu0 0
      %1496 = vmatpush1.bf16.msra.mxu0 0
      %1497 = vmatprep.subr.bf16.mxu0 0
      %1498 = vmatpush1.bf16.msra.mxu0 0
      %1499 = vmatprep.subr.bf16.mxu0 0
      %1500 = vmatpush1.bf16.msra.mxu0 0
      %1501 = vmatprep.subr.bf16.mxu0 0
      %1502 = vmatpush1.bf16.msra.mxu0 0
      %1503 = vmatprep.subr.bf16.mxu0 0
      %1504 = vmatpush1.bf16.msra.mxu0 0
      %1505 = vmatprep.subr.bf16.mxu0 0
      %1506 = vmatpush1.bf16.msra.mxu0 0
      %1507 = vmatprep.subr.bf16.mxu0 0
      %1508 = vmatpush1.bf16.msra.mxu0 0
      %1509 = vmatprep.subr.bf16.mxu0 0
      %1510 = vmatpush1.bf16.msra.mxu0 0
      %1511 = vmatprep.mubr.bf16.mxu0 0
      %1512 = vmatmul.mubr.bf16.gmra.mrb[0].mxu0 %v1477
      %v1513 = vpop.f32.mrb[0].mxu0
      %v1514 = vadd.f32 %v1462, %v1513
      %v1515 = vpop.f32.mrb[0].mxu0
      %v1516 = vpop.f32.mrb[0].mxu0
      %v1517 = vpop.f32.mrb[0].mxu0
      %1518 = vdwg.mxu0
      %v1519 = vmul.f32 %v1514, 0.5
      %v1520 = vmul.f32 %v1514, %v1514
      %v1521 = vmul.f32 %v1520, %v1514
      %v1522 = vmul.f32 %v1521, 0.044715
      %v1523 = vadd.f32 %v1514, %v1522
      %v1524 = vmul.f32 %v1523, 0.7978846
      %v1525 = vtanh.pop %v1524
      %v1526 = vadd.f32 %v1525, 1.0
      %v1527 = vmul.f32 %v1519, %v1526
      %v1528 = vpack.c.bf16 %v1527, %v1527
      %v1529 = vld [vmem:[%s659] sm:$0xf]
      %v1530 = vld [vmem:[%s659 + $0x4] sm:$0xf]
      %v1531 = vld [vmem:[%s659 + $0x8] sm:$0xf]
      %v1532 = vld [vmem:[%s659 + $0xc] sm:$0xf]
      %v1533 = vld [vmem:[%s659 + $0x10] sm:$0xf]
      %v1534 = vld [vmem:[%s659 + $0x14] sm:$0xf]
      %v1535 = vld [vmem:[%s659 + $0x18] sm:$0xf]
      %v1536 = vld [vmem:[%s659 + $0x1c] sm:$0xf]
      %v1537 = vld [vmem:[%s659 + $0x20] sm:$0xf]
      %v1538 = vld [vmem:[%s659 + $0x24] sm:$0xf]
      %v1539 = vld [vmem:[%s659 + $0x28] sm:$0xf]
      %v1540 = vld [vmem:[%s659 + $0x2c] sm:$0xf]
      %v1541 = vld [vmem:[%s659 + $0x30] sm:$0xf]
      %v1542 = vld [vmem:[%s659 + $0x34] sm:$0xf]
      %v1543 = vld [vmem:[%s659 + $0x38] sm:$0xf]
      %v1544 = vld [vmem:[%s659 + $0x3c] sm:$0xf]
      %v1561 = vunpack.c.l.b16 %v1529
      %v1562 = vunpack.c.l.b16 %v1530
      %v1563 = vunpack.c.l.b16 %v1531
      %v1564 = vunpack.c.l.b16 %v1532
      %v1565 = vunpack.c.l.b16 %v1533
      %v1566 = vunpack.c.l.b16 %v1534
      %v1567 = vunpack.c.l.b16 %v1535
      %v1568 = vunpack.c.l.b16 %v1536
      %v1569 = vunpack.c.l.b16 %v1537
      %v1570 = vunpack.c.l.b16 %v1538
      %v1571 = vunpack.c.l.b16 %v1539
      %v1572 = vunpack.c.l.b16 %v1540
      %v1573 = vunpack.c.l.b16 %v1541
      %v1574 = vunpack.c.l.b16 %v1542
      %v1575 = vunpack.c.l.b16 %v1543
      %v1576 = vunpack.c.l.b16 %v1544
      %v1577 = vpack.c.b16 %v1562, %v1561
      %v1578 = vpack.c.b16 %v1564, %v1563
      %v1579 = vpack.c.b16 %v1566, %v1565
      %v1580 = vpack.c.b16 %v1568, %v1567
      %v1581 = vpack.c.b16 %v1570, %v1569
      %v1582 = vpack.c.b16 %v1572, %v1571
      %v1583 = vpack.c.b16 %v1574, %v1573
      %v1584 = vpack.c.b16 %v1576, %v1575
      %1593 = vmatprep.subr.bf16.mxu0 0
      %1594 = vmatpush1.bf16.msra.mxu0 %v1577
      %1595 = vmatprep.subr.bf16.mxu0 0
      %1596 = vmatpush1.bf16.msra.mxu0 %v1578
      %1597 = vmatprep.subr.bf16.mxu0 0
      %1598 = vmatpush1.bf16.msra.mxu0 %v1579
      %1599 = vmatprep.subr.bf16.mxu0 0
      %1600 = vmatpush1.bf16.msra.mxu0 %v1580
      %1601 = vmatprep.subr.bf16.mxu0 0
      %1602 = vmatpush1.bf16.msra.mxu0 %v1581
      %1603 = vmatprep.subr.bf16.mxu0 0
      %1604 = vmatpush1.bf16.msra.mxu0 %v1582
      %1605 = vmatprep.subr.bf16.mxu0 0
      %1606 = vmatpush1.bf16.msra.mxu0 %v1583
      %1607 = vmatprep.subr.bf16.mxu0 0
      %1608 = vmatpush1.bf16.msra.mxu0 %v1584
      %1609 = vmatprep.subr.bf16.mxu0 0
      %1610 = vmatpush1.bf16.msra.mxu0 0
      %1611 = vmatprep.subr.bf16.mxu0 0
      %1612 = vmatpush1.bf16.msra.mxu0 0
      %1613 = vmatprep.subr.bf16.mxu0 0
      %1614 = vmatpush1.bf16.msra.mxu0 0
      %1615 = vmatprep.subr.bf16.mxu0 0
      %1616 = vmatpush1.bf16.msra.mxu0 0
      %1617 = vmatprep.subr.bf16.mxu0 0
      %1618 = vmatpush1.bf16.msra.mxu0 0
      %1619 = vmatprep.subr.bf16.mxu0 0
      %1620 = vmatpush1.bf16.msra.mxu0 0
      %1621 = vmatprep.subr.bf16.mxu0 0
      %1622 = vmatpush1.bf16.msra.mxu0 0
      %1623 = vmatprep.subr.bf16.mxu0 0
      %1624 = vmatpush1.bf16.msra.mxu0 0
      %1625 = vmatprep.mubr.bf16.mxu0 0
      %1626 = vmatmul.mubr.bf16.gmra.mrb[0].mxu0 %v1528
      %v1627 = vpop.f32.mrb[0].mxu0
      %v1628 = vadd.f32 0.0, %v1627
      %v1629 = vpop.f32.mrb[0].mxu0
      %v1630 = vpop.f32.mrb[0].mxu0
      %v1631 = vpop.f32.mrb[0].mxu0
      %1632 = vdwg.mxu0
      %v1633 = vadd.f32 %v1422, %v1628
      %v1634 = vld [vmem:[%s662] sm:$0x1]
      %v1636 = vlaneseq
      %v1637 = vshrl.u32 %v1636, 7
      %v1638 = vsub.s32 0, %v1637
      %v1639 = vrot.slane %v1634, %v1638
      %v1641 = vadd.f32 %v1633, %v1639
      %1642 = vst.msk [vmem:[%s666] sm:$0xff] %vm678, %v1641
      %p1643 = scmp.lt.s32.totalorder %s29, 1
      %s1644 = scalar_select %p1643, %s29, 1
      %s1645 = smul.addr %s1644, 8
      %s1646 = scalar_lea.vmem %s14, %s1645
      // Predicated region
      $region81: #{_jit_forward.1} parent=75 // pred_check
        %p1647 = pneg %p414
      $region82: #{_jit_forward.1} parent=75 // pred_check_branch
        %1649 = sbr.rel (%p1647) target = $region84
      $region83: #{_jit_forward.1} parent=75 // pred_region
        _
      $region84: #{_jit_forward.1} parent=75 // pred_fallthru
        _
    $region76: #{_jit_forward.1} parent=5 // pred_fallthru
      _
    %p1650 = scmp.le.s32.totalorder 2, %s20
    // Predicated region
    $region85: #{_jit_forward.1} parent=5 // pred_check
      %p1651 = pneg %p1650
    $region86: #{_jit_forward.1} parent=5 // pred_check_branch
      %1653 = sbr.rel (%p1651) target = $region88
    $region87: #{_jit_forward.1} parent=5 // pred_region
      %s1654 = ssub.s32 %s20, 2
      // Predicated region
      $region89: #{_jit_forward.1} parent=87 // pred_check
        %p1655 = pneg %p420
      $region90: #{_jit_forward.1} parent=87 // pred_check_branch
        %1657 = sbr.rel (%p1655) target = $region92
      $region91: #{_jit_forward.1} parent=87 // pred_region
        %p1658 = scmp.lt.s32.totalorder %s31, 1
        %s1659 = scalar_select %p1658, %s31, 1
        %s1660 = smul.addr %s1659, 8
        %s1661 = scalar_lea.vmem %s14, %s1660
      $region92: #{_jit_forward.1} parent=87 // pred_fallthru
        _
    $region88: #{_jit_forward.1} parent=5 // pred_fallthru
      _
  $region6: #{_jit_forward.1} parent=0 // loop_footer
    %s24 = sadd.s32 1, %s20
  $region7: #{_jit_forward.1} parent=0 // loop_footer_branch
    %19 = sbr.rel target = $region3
  $region8: #{_jit_forward.1} parent=0 // loop_exit
    _

</llo_original>
